<compile_context>
chip_gen: v6e
topology: v6e:2x2x1
jax: 0.10.0
libtpu: 0.0.40
codegen_flags: <defaults>
</compile_context>

<pallas_src>
import jax
import jax.numpy as jnp
import numpy as np
from jax.experimental import pallas as pl
from jax.experimental.pallas import tpu as pltpu

N_EMBD = 384      # matches module's n_embd
BLOCK_SIZE = 128  # matches module's block_size (causal mask buffer size)
HEAD_SIZE = 64


def head_kernel(x_ref, w_ref, o_ref):
    # x_ref: (B, T, C); w_ref: (C, 3H) fused [q | k | v]; o_ref: (B, T, H)
    B, T, C = x_ref.shape
    H = o_ref.shape[-1]

    # Collapse batch into the M dimension for the projection matmul.
    # (B,T,C) -> (B*T,C): leading-dim collapse, layout-preserving.
    x2 = x_ref[...].reshape(B * T, C)
    w = w_ref[...]

    # Fused QKV projection on the MXU: bf16 operands, f32 accumulation.
    qkv = jnp.dot(x2.astype(jnp.bfloat16), w.astype(jnp.bfloat16),
                  preferred_element_type=jnp.float32)          # (B*T, 3H)
    qkv = qkv.reshape(B, T, 3 * H)

    # Fold the 1/sqrt(H) scale into q (small tensor) instead of the (T,T)
    # score matrix.
    scale = jnp.float32(H) ** jnp.float32(-0.5)
    q = qkv[:, :, 0 * H:1 * H] * scale                         # (B, T, H)
    k = qkv[:, :, 1 * H:2 * H]
    v = qkv[:, :, 2 * H:3 * H]

    # Scores: contraction on the last dims -> no explicit k transpose.
    wei = jnp.einsum('bqd,bkd->bqk',
                     q.astype(jnp.bfloat16), k.astype(jnp.bfloat16),
                     preferred_element_type=jnp.float32)        # (B, T, T)

    # Causal (tril) mask — matches masked_fill(tril == 0, -inf).
    row = jax.lax.broadcasted_iota(jnp.int32, (T, T), 0)
    col = jax.lax.broadcasted_iota(jnp.int32, (T, T), 1)
    causal = (col <= row)[None, :, :]
    wei = jnp.where(causal, wei, -jnp.inf)

    # Numerically-stable softmax along the last axis (f32 on VPU, exp on EUP).
    m = jnp.max(wei, axis=-1, keepdims=True)
    p = jnp.exp(wei - m)
    denom = jnp.sum(p, axis=-1, keepdims=True)
    probs = p * pl.reciprocal(denom, approx=True)

    # NOTE: dropout on `probs` is the identity in eval mode.
    out = jnp.einsum('bqk,bkd->bqd',
                     probs.astype(jnp.bfloat16), v.astype(jnp.bfloat16),
                     preferred_element_type=jnp.float32)        # (B, T, H)
    o_ref[...] = out.astype(o_ref.dtype)


@jax.jit
def head_forward(x, wk, wq, wv):
    B, T, C = x.shape
    H = wk.shape[1]
    # Fuse the three projections into one (C, 3H) weight: [q | k | v].
    w_qkv = jnp.concatenate([wq, wk, wv], axis=1)
    return pl.pallas_call(
        head_kernel,
        out_shape=jax.ShapeDtypeStruct((B, T, H), x.dtype),
        # Single grid step: whole arrays resident in VMEM (< 1 MiB total).
        in_specs=[
            pl.BlockSpec(memory_space=pltpu.MemorySpace.VMEM),
            pl.BlockSpec(memory_space=pltpu.MemorySpace.VMEM),
        ],
        out_specs=pl.BlockSpec(memory_space=pltpu.MemorySpace.VMEM),
    )(x, w_qkv)


def head_reference(x, wk, wq, wv):
    """Pure-JAX f32 reference matching the PyTorch forward (eval mode)."""
    k = x @ wk
    q = x @ wq
    v = x @ wv
    wei = (q @ jnp.swapaxes(k, -2, -1)) * (k.shape[-1] ** -0.5)
    T = x.shape[1]
    tril = jnp.tril(jnp.ones((T, T), dtype=bool))
    wei = jnp.where(tril[None, :, :], wei, -jnp.inf)
    wei = jax.nn.softmax(wei, axis=-1)
    return wei @ v


if __name__ == "__main__":
    B, T, C, H = 2, BLOCK_SIZE, N_EMBD, HEAD_SIZE   # T <= block_size

    key = jax.random.PRNGKey(0)
    kx, kk, kq, kv = jax.random.split(key, 4)
    x = jax.random.normal(kx, (B, T, C), dtype=jnp.float32)
    # deterministic "Linear(no bias)" weights, stored as (in, out)
    bound = 1.0 / np.sqrt(C)
    wk = jax.random.uniform(kk, (C, H), jnp.float32, -bound, bound)
    wq = jax.random.uniform(kq, (C, H), jnp.float32, -bound, bound)
    wv = jax.random.uniform(kv, (C, H), jnp.float32, -bound, bound)

    out = head_forward(x, wk, wq, wv)
    out = jax.block_until_ready(out)

    ref = head_reference(x, wk, wq, wv)
    assert out.shape == (B, T, H)
    # bf16 MXU operands + approx reciprocal -> relaxed (standard attention)
    # tolerance vs the f32 reference.
    np.testing.assert_allclose(np.asarray(out), np.asarray(ref),
                               rtol=3e-2, atol=3e-2)
    print("KERNEL_OK")
</pallas_src>

<mosaic_0001>
module attributes {stable_mosaic.version = 11 : i64} {
  func.func @head_kernel(%arg0: memref<2x128x384xf32, #tpu.memory_space<vmem>>, %arg1: memref<384x192xf32, #tpu.memory_space<vmem>>, %arg2: memref<2x128x64xf32, #tpu.memory_space<vmem>>) attributes {dimension_semantics = [], scalar_prefetch = 0 : i64, scratch_operands = 0 : i64, tpu.core_type = #tpu.core_type<tc>} {
    %c0 = arith.constant 0 : index
    %c0_0 = arith.constant 0 : index
    %c0_1 = arith.constant 0 : index
    %0 = vector.load %arg0[%c0, %c0_0, %c0_1] : memref<2x128x384xf32, #tpu.memory_space<vmem>>, vector<2x128x384xf32>
    %1 = vector.shape_cast %0 : vector<2x128x384xf32> to vector<256x384xf32>
    %c0_2 = arith.constant 0 : index
    %c0_3 = arith.constant 0 : index
    %2 = vector.load %arg1[%c0_2, %c0_3] : memref<384x192xf32, #tpu.memory_space<vmem>>, vector<384x192xf32>
    %3 = arith.truncf %1 : vector<256x384xf32> to vector<256x384xbf16>
    %4 = arith.truncf %2 : vector<384x192xf32> to vector<384x192xbf16>
    %cst = arith.constant dense<0.000000e+00> : vector<256x192xf32>
    %5 = tpu.matmul %3, %4, %cst {dimension_numbers = #tpu.dot_dimension_numbers<[1], [0], [0], [1], [0, 0, 1, 1], [], []>} : vector<256x384xbf16>, vector<384x192xbf16>, vector<256x192xf32> -> vector<256x192xf32>
    %6 = vector.shape_cast %5 : vector<256x192xf32> to vector<2x128x192xf32>
    %cst_4 = arith.constant 6.400000e+01 : f32
    %cst_5 = arith.constant -5.000000e-01 : f32
    %7 = math.powf %cst_4, %cst_5 : f32
    %8 = vector.extract_strided_slice %6 {offsets = [0, 0, 0], sizes = [2, 128, 64], strides = [1, 1, 1]} : vector<2x128x192xf32> to vector<2x128x64xf32>
    %9 = vector.broadcast %7 : f32 to vector<2x128x64xf32>
    %10 = arith.mulf %8, %9 : vector<2x128x64xf32>
    %11 = vector.extract_strided_slice %6 {offsets = [0, 0, 64], sizes = [2, 128, 64], strides = [1, 1, 1]} : vector<2x128x192xf32> to vector<2x128x64xf32>
    %12 = vector.extract_strided_slice %6 {offsets = [0, 0, 128], sizes = [2, 128, 64], strides = [1, 1, 1]} : vector<2x128x192xf32> to vector<2x128x64xf32>
    %13 = arith.truncf %10 : vector<2x128x64xf32> to vector<2x128x64xbf16>
    %14 = arith.truncf %11 : vector<2x128x64xf32> to vector<2x128x64xbf16>
    "tpu.trace_start"() <{level = 10 : i32, message = "bqd,bkd->bqk"}> : () -> ()
    %cst_6 = arith.constant dense<0.000000e+00> : vector<2x128x128xf32>
    %15 = tpu.matmul %13, %14, %cst_6 {dimension_numbers = #tpu.dot_dimension_numbers<[2], [2], [1], [1], [0, 0, 0, 1, 1, 1], [0], [0]>} : vector<2x128x64xbf16>, vector<2x128x64xbf16>, vector<2x128x128xf32> -> vector<2x128x128xf32>
    "tpu.trace_stop"() : () -> ()
    %16 = tpu.iota {dimensions = array<i32: 0>} : vector<128x128xi32>
    %17 = tpu.iota {dimensions = array<i32: 1>} : vector<128x128xi32>
    %18 = arith.cmpi sle, %17, %16 : vector<128x128xi32>
    %19 = vector.shape_cast %18 : vector<128x128xi1> to vector<1x128x128xi1>
    %cst_7 = arith.constant 0xFF800000 : f32
    %20 = vector.shape_cast %19 : vector<1x128x128xi1> to vector<1x128x128xi1>
    %21 = vector.broadcast %20 : vector<1x128x128xi1> to vector<2x128x128xi1>
    %22 = vector.broadcast %cst_7 : f32 to vector<2x128x128xf32>
    %23 = arith.select %21, %15, %22 : vector<2x128x128xi1>, vector<2x128x128xf32>
    %cst_8 = arith.constant dense<0xFF800000> : vector<2x128xf32>
    %24 = vector.multi_reduction <maximumf>, %23, %cst_8 [2] : vector<2x128x128xf32> to vector<2x128xf32>
    %25 = vector.shape_cast %24 : vector<2x128xf32> to vector<2x128x1xf32>
    %26 = vector.broadcast %25 : vector<2x128x1xf32> to vector<2x128x128xf32>
    %27 = arith.subf %23, %26 : vector<2x128x128xf32>
    %28 = math.exp %27 : vector<2x128x128xf32>
    %cst_9 = arith.constant dense<0.000000e+00> : vector<2x128xf32>
    %29 = vector.multi_reduction <add>, %28, %cst_9 [2] : vector<2x128x128xf32> to vector<2x128xf32>
    %30 = vector.shape_cast %29 : vector<2x128xf32> to vector<2x128x1xf32>
    %31 = tpu.reciprocal %30 {approx = true} : vector<2x128x1xf32> -> vector<2x128x1xf32>
    %32 = vector.broadcast %31 : vector<2x128x1xf32> to vector<2x128x128xf32>
    %33 = arith.mulf %28, %32 : vector<2x128x128xf32>
    %34 = arith.truncf %33 : vector<2x128x128xf32> to vector<2x128x128xbf16>
    %35 = arith.truncf %12 : vector<2x128x64xf32> to vector<2x128x64xbf16>
    "tpu.trace_start"() <{level = 10 : i32, message = "bqk,bkd->bqd"}> : () -> ()
    %cst_10 = arith.constant dense<0.000000e+00> : vector<2x128x64xf32>
    %36 = tpu.matmul %34, %35, %cst_10 {dimension_numbers = #tpu.dot_dimension_numbers<[2], [1], [1], [2], [0, 0, 0, 1, 1, 2], [0], [0]>} : vector<2x128x128xbf16>, vector<2x128x64xbf16>, vector<2x128x64xf32> -> vector<2x128x64xf32>
    "tpu.trace_stop"() : () -> ()
    %c0_11 = arith.constant 0 : index
    %c0_12 = arith.constant 0 : index
    %c0_13 = arith.constant 0 : index
    %37 = vector.load %arg2[%c0_11, %c0_12, %c0_13] : memref<2x128x64xf32, #tpu.memory_space<vmem>>, vector<2x128x64xf32>
    tpu.vector_store %arg2[%c0_11, %c0_12, %c0_13], %36 {strides = array<i32>} : memref<2x128x64xf32, #tpu.memory_space<vmem>>, vector<2x128x64xf32>,
    return
  }
}

</mosaic_0001>

<llo_original>
// kernel: head_forward.1
$region0: #{head_forward.1}
  #allocation0 [shape = 'u32[]', space=smem, size = 0x4, offset = 0x4, fixed_abs, tag = 'smem constant byte address 0x4 - core index']
  #allocation1 [shape = 'u32[144,128]{1,0:T(1,128)}', space=vmem, size = 0x12000, scoped, tag = 'internal scratch']
  %s0 = inlined_call_operand.vmem [shape: f32[2,128,384], index: 0, kind: input, shape index: {}]
  %s1 = inlined_call_operand.vmem [shape: f32[384,192], index: 1, kind: input, shape index: {}]
  %s2 = inlined_call_operand.vmem [shape: f32[2,128,64], index: 2, kind: output, shape index: {}]
  %s3 = sld [smem:[#allocation0]]
  $region18: #{head_forward.1} parent=0
    _
  %s5 = ssub.s32 1, %s3
  %s6 = scalar_select 0, %s5, %s3
  // Predicated region
  $region2: #{head_forward.1} parent=0 // pred_check
    _
  $region3: #{head_forward.1} parent=0 // pred_check_branch
    %8 = sbr.rel (0) target = $region5
  $region4: #{head_forward.1} parent=0 // pred_region
    _
  $region5: #{head_forward.1} parent=0 // pred_fallthru
    _
  // Predicated region
  $region6: #{head_forward.1} parent=0 // pred_check
    _
  $region7: #{head_forward.1} parent=0 // pred_check_branch
    %10 = sbr.rel (0) target = $region9
  $region8: #{head_forward.1} parent=0 // pred_region
    _
  $region9: #{head_forward.1} parent=0 // pred_fallthru
    _
  %v12 = vld [vmem:[%s0] sm:$0xff]
  %v13 = vld [vmem:[%s0 + $0x8] sm:$0xff]
  %v14 = vld [vmem:[%s0 + $0x10] sm:$0xff]
  %v15 = vld [vmem:[%s0 + $0x18] sm:$0xff]
  %v16 = vld [vmem:[%s0 + $0x20] sm:$0xff]
  %v17 = vld [vmem:[%s0 + $0x28] sm:$0xff]
  %v18 = vld [vmem:[%s0 + $0x30] sm:$0xff]
  %v19 = vld [vmem:[%s0 + $0x38] sm:$0xff]
  %v20 = vld [vmem:[%s0 + $0x40] sm:$0xff]
  %v21 = vld [vmem:[%s0 + $0x48] sm:$0xff]
  %v22 = vld [vmem:[%s0 + $0x50] sm:$0xff]
  %v23 = vld [vmem:[%s0 + $0x58] sm:$0xff]
  %v24 = vld [vmem:[%s0 + $0x60] sm:$0xff]
  %v25 = vld [vmem:[%s0 + $0x68] sm:$0xff]
  %v26 = vld [vmem:[%s0 + $0x70] sm:$0xff]
  %v27 = vld [vmem:[%s0 + $0x78] sm:$0xff]
  %v28 = vld [vmem:[%s0 + $0x80] sm:$0xff]
  %v29 = vld [vmem:[%s0 + $0x88] sm:$0xff]
  %v30 = vld [vmem:[%s0 + $0x90] sm:$0xff]
  %v31 = vld [vmem:[%s0 + $0x98] sm:$0xff]
  %v32 = vld [vmem:[%s0 + $0xa0] sm:$0xff]
  %v33 = vld [vmem:[%s0 + $0xa8] sm:$0xff]
  %v34 = vld [vmem:[%s0 + $0xb0] sm:$0xff]
  %v35 = vld [vmem:[%s0 + $0xb8] sm:$0xff]
  %v36 = vld [vmem:[%s0 + $0xc0] sm:$0xff]
  %v37 = vld [vmem:[%s0 + $0xc8] sm:$0xff]
  %v38 = vld [vmem:[%s0 + $0xd0] sm:$0xff]
  %v39 = vld [vmem:[%s0 + $0xd8] sm:$0xff]
  %v40 = vld [vmem:[%s0 + $0xe0] sm:$0xff]
  %v41 = vld [vmem:[%s0 + $0xe8] sm:$0xff]
  %v42 = vld [vmem:[%s0 + $0xf0] sm:$0xff]
  %v43 = vld [vmem:[%s0 + $0xf8] sm:$0xff]
  %v44 = vld [vmem:[%s0 + $0x100] sm:$0xff]
  %v45 = vld [vmem:[%s0 + $0x108] sm:$0xff]
  %v46 = vld [vmem:[%s0 + $0x110] sm:$0xff]
  %v47 = vld [vmem:[%s0 + $0x118] sm:$0xff]
  %v48 = vld [vmem:[%s0 + $0x120] sm:$0xff]
  %v49 = vld [vmem:[%s0 + $0x128] sm:$0xff]
  %v50 = vld [vmem:[%s0 + $0x130] sm:$0xff]
  %v51 = vld [vmem:[%s0 + $0x138] sm:$0xff]
  %v52 = vld [vmem:[%s0 + $0x140] sm:$0xff]
  %v53 = vld [vmem:[%s0 + $0x148] sm:$0xff]
  %v54 = vld [vmem:[%s0 + $0x150] sm:$0xff]
  %v55 = vld [vmem:[%s0 + $0x158] sm:$0xff]
  %v56 = vld [vmem:[%s0 + $0x160] sm:$0xff]
  %v57 = vld [vmem:[%s0 + $0x168] sm:$0xff]
  %v58 = vld [vmem:[%s0 + $0x170] sm:$0xff]
  %v59 = vld [vmem:[%s0 + $0x178] sm:$0xff]
  %v60 = vld [vmem:[%s0 + $0x180] sm:$0xff]
  %v61 = vld [vmem:[%s0 + $0x188] sm:$0xff]
  %v62 = vld [vmem:[%s0 + $0x190] sm:$0xff]
  %v63 = vld [vmem:[%s0 + $0x198] sm:$0xff]
  %v64 = vld [vmem:[%s0 + $0x1a0] sm:$0xff]
  %v65 = vld [vmem:[%s0 + $0x1a8] sm:$0xff]
  %v66 = vld [vmem:[%s0 + $0x1b0] sm:$0xff]
  %v67 = vld [vmem:[%s0 + $0x1b8] sm:$0xff]
  %v68 = vld [vmem:[%s0 + $0x1c0] sm:$0xff]
  %v69 = vld [vmem:[%s0 + $0x1c8] sm:$0xff]
  %v70 = vld [vmem:[%s0 + $0x1d0] sm:$0xff]
  %v71 = vld [vmem:[%s0 + $0x1d8] sm:$0xff]
  %v72 = vld [vmem:[%s0 + $0x1e0] sm:$0xff]
  %v73 = vld [vmem:[%s0 + $0x1e8] sm:$0xff]
  %v74 = vld [vmem:[%s0 + $0x1f0] sm:$0xff]
  %v75 = vld [vmem:[%s0 + $0x1f8] sm:$0xff]
  %v76 = vld [vmem:[%s0 + $0x200] sm:$0xff]
  %v77 = vld [vmem:[%s0 + $0x208] sm:$0xff]
  %v78 = vld [vmem:[%s0 + $0x210] sm:$0xff]
  %v79 = vld [vmem:[%s0 + $0x218] sm:$0xff]
  %v80 = vld [vmem:[%s0 + $0x220] sm:$0xff]
  %v81 = vld [vmem:[%s0 + $0x228] sm:$0xff]
  %v82 = vld [vmem:[%s0 + $0x230] sm:$0xff]
  %v83 = vld [vmem:[%s0 + $0x238] sm:$0xff]
  %v84 = vld [vmem:[%s0 + $0x240] sm:$0xff]
  %v85 = vld [vmem:[%s0 + $0x248] sm:$0xff]
  %v86 = vld [vmem:[%s0 + $0x250] sm:$0xff]
  %v87 = vld [vmem:[%s0 + $0x258] sm:$0xff]
  %v88 = vld [vmem:[%s0 + $0x260] sm:$0xff]
  %v89 = vld [vmem:[%s0 + $0x268] sm:$0xff]
  %v90 = vld [vmem:[%s0 + $0x270] sm:$0xff]
  %v91 = vld [vmem:[%s0 + $0x278] sm:$0xff]
  %v92 = vld [vmem:[%s0 + $0x280] sm:$0xff]
  %v93 = vld [vmem:[%s0 + $0x288] sm:$0xff]
  %v94 = vld [vmem:[%s0 + $0x290] sm:$0xff]
  %v95 = vld [vmem:[%s0 + $0x298] sm:$0xff]
  %v96 = vld [vmem:[%s0 + $0x2a0] sm:$0xff]
  %v97 = vld [vmem:[%s0 + $0x2a8] sm:$0xff]
  %v98 = vld [vmem:[%s0 + $0x2b0] sm:$0xff]
  %v99 = vld [vmem:[%s0 + $0x2b8] sm:$0xff]
  %v100 = vld [vmem:[%s0 + $0x2c0] sm:$0xff]
  %v101 = vld [vmem:[%s0 + $0x2c8] sm:$0xff]
  %v102 = vld [vmem:[%s0 + $0x2d0] sm:$0xff]
  %v103 = vld [vmem:[%s0 + $0x2d8] sm:$0xff]
  %v104 = vld [vmem:[%s0 + $0x2e0] sm:$0xff]
  %v105 = vld [vmem:[%s0 + $0x2e8] sm:$0xff]
  %v106 = vld [vmem:[%s0 + $0x2f0] sm:$0xff]
  %v107 = vld [vmem:[%s0 + $0x2f8] sm:$0xff]
  %v108 = vld [vmem:[%s1] sm:$0xff]
  %v109 = vld [vmem:[%s1 + $0x8] sm:$0xff]
  %v110 = vld [vmem:[%s1 + $0x10] sm:$0xff]
  %v111 = vld [vmem:[%s1 + $0x18] sm:$0xff]
  %v112 = vld [vmem:[%s1 + $0x20] sm:$0xff]
  %v113 = vld [vmem:[%s1 + $0x28] sm:$0xff]
  %v114 = vld [vmem:[%s1 + $0x30] sm:$0xff]
  %v115 = vld [vmem:[%s1 + $0x38] sm:$0xff]
  %v116 = vld [vmem:[%s1 + $0x40] sm:$0xff]
  %v117 = vld [vmem:[%s1 + $0x48] sm:$0xff]
  %v118 = vld [vmem:[%s1 + $0x50] sm:$0xff]
  %v119 = vld [vmem:[%s1 + $0x58] sm:$0xff]
  %v120 = vld [vmem:[%s1 + $0x60] sm:$0xff]
  %v121 = vld [vmem:[%s1 + $0x68] sm:$0xff]
  %v122 = vld [vmem:[%s1 + $0x70] sm:$0xff]
  %v123 = vld [vmem:[%s1 + $0x78] sm:$0xff]
  %v124 = vld [vmem:[%s1 + $0x80] sm:$0xff]
  %v125 = vld [vmem:[%s1 + $0x88] sm:$0xff]
  %v126 = vld [vmem:[%s1 + $0x90] sm:$0xff]
  %v127 = vld [vmem:[%s1 + $0x98] sm:$0xff]
  %v128 = vld [vmem:[%s1 + $0xa0] sm:$0xff]
  %v129 = vld [vmem:[%s1 + $0xa8] sm:$0xff]
  %v130 = vld [vmem:[%s1 + $0xb0] sm:$0xff]
  %v131 = vld [vmem:[%s1 + $0xb8] sm:$0xff]
  %v132 = vld [vmem:[%s1 + $0xc0] sm:$0xff]
  %v133 = vld [vmem:[%s1 + $0xc8] sm:$0xff]
  %v134 = vld [vmem:[%s1 + $0xd0] sm:$0xff]
  %v135 = vld [vmem:[%s1 + $0xd8] sm:$0xff]
  %v136 = vld [vmem:[%s1 + $0xe0] sm:$0xff]
  %v137 = vld [vmem:[%s1 + $0xe8] sm:$0xff]
  %v138 = vld [vmem:[%s1 + $0xf0] sm:$0xff]
  %v139 = vld [vmem:[%s1 + $0xf8] sm:$0xff]
  %v140 = vld [vmem:[%s1 + $0x100] sm:$0xff]
  %v141 = vld [vmem:[%s1 + $0x108] sm:$0xff]
  %v142 = vld [vmem:[%s1 + $0x110] sm:$0xff]
  %v143 = vld [vmem:[%s1 + $0x118] sm:$0xff]
  %v144 = vld [vmem:[%s1 + $0x120] sm:$0xff]
  %v145 = vld [vmem:[%s1 + $0x128] sm:$0xff]
  %v146 = vld [vmem:[%s1 + $0x130] sm:$0xff]
  %v147 = vld [vmem:[%s1 + $0x138] sm:$0xff]
  %v148 = vld [vmem:[%s1 + $0x140] sm:$0xff]
  %v149 = vld [vmem:[%s1 + $0x148] sm:$0xff]
  %v150 = vld [vmem:[%s1 + $0x150] sm:$0xff]
  %v151 = vld [vmem:[%s1 + $0x158] sm:$0xff]
  %v152 = vld [vmem:[%s1 + $0x160] sm:$0xff]
  %v153 = vld [vmem:[%s1 + $0x168] sm:$0xff]
  %v154 = vld [vmem:[%s1 + $0x170] sm:$0xff]
  %v155 = vld [vmem:[%s1 + $0x178] sm:$0xff]
  %v156 = vld [vmem:[%s1 + $0x180] sm:$0xff]
  %v157 = vld [vmem:[%s1 + $0x188] sm:$0xff]
  %v158 = vld [vmem:[%s1 + $0x190] sm:$0xff]
  %v159 = vld [vmem:[%s1 + $0x198] sm:$0xff]
  %v160 = vld [vmem:[%s1 + $0x1a0] sm:$0xff]
  %v161 = vld [vmem:[%s1 + $0x1a8] sm:$0xff]
  %v162 = vld [vmem:[%s1 + $0x1b0] sm:$0xff]
  %v163 = vld [vmem:[%s1 + $0x1b8] sm:$0xff]
  %v164 = vld [vmem:[%s1 + $0x1c0] sm:$0xff]
  %v165 = vld [vmem:[%s1 + $0x1c8] sm:$0xff]
  %v166 = vld [vmem:[%s1 + $0x1d0] sm:$0xff]
  %v167 = vld [vmem:[%s1 + $0x1d8] sm:$0xff]
  %v168 = vld [vmem:[%s1 + $0x1e0] sm:$0xff]
  %v169 = vld [vmem:[%s1 + $0x1e8] sm:$0xff]
  %v170 = vld [vmem:[%s1 + $0x1f0] sm:$0xff]
  %v171 = vld [vmem:[%s1 + $0x1f8] sm:$0xff]
  %v172 = vld [vmem:[%s1 + $0x200] sm:$0xff]
  %v173 = vld [vmem:[%s1 + $0x208] sm:$0xff]
  %v174 = vld [vmem:[%s1 + $0x210] sm:$0xff]
  %v175 = vld [vmem:[%s1 + $0x218] sm:$0xff]
  %v176 = vld [vmem:[%s1 + $0x220] sm:$0xff]
  %v177 = vld [vmem:[%s1 + $0x228] sm:$0xff]
  %v178 = vld [vmem:[%s1 + $0x230] sm:$0xff]
  %v179 = vld [vmem:[%s1 + $0x238] sm:$0xff]
  %v180 = vld [vmem:[%s1 + $0x240] sm:$0xff]
  %v181 = vld [vmem:[%s1 + $0x248] sm:$0xff]
  %v182 = vld [vmem:[%s1 + $0x250] sm:$0xff]
  %v183 = vld [vmem:[%s1 + $0x258] sm:$0xff]
  %v184 = vld [vmem:[%s1 + $0x260] sm:$0xff]
  %v185 = vld [vmem:[%s1 + $0x268] sm:$0xff]
  %v186 = vld [vmem:[%s1 + $0x270] sm:$0xff]
  %v187 = vld [vmem:[%s1 + $0x278] sm:$0xff]
  %v188 = vld [vmem:[%s1 + $0x280] sm:$0xff]
  %v189 = vld [vmem:[%s1 + $0x288] sm:$0xff]
  %v190 = vld [vmem:[%s1 + $0x290] sm:$0xff]
  %v191 = vld [vmem:[%s1 + $0x298] sm:$0xff]
  %v192 = vld [vmem:[%s1 + $0x2a0] sm:$0xff]
  %v193 = vld [vmem:[%s1 + $0x2a8] sm:$0xff]
  %v194 = vld [vmem:[%s1 + $0x2b0] sm:$0xff]
  %v195 = vld [vmem:[%s1 + $0x2b8] sm:$0xff]
  %v196 = vld [vmem:[%s1 + $0x2c0] sm:$0xff]
  %v197 = vld [vmem:[%s1 + $0x2c8] sm:$0xff]
  %v198 = vld [vmem:[%s1 + $0x2d0] sm:$0xff]
  %v199 = vld [vmem:[%s1 + $0x2d8] sm:$0xff]
  %v200 = vld [vmem:[%s1 + $0x2e0] sm:$0xff]
  %v201 = vld [vmem:[%s1 + $0x2e8] sm:$0xff]
  %v202 = vld [vmem:[%s1 + $0x2f0] sm:$0xff]
  %v203 = vld [vmem:[%s1 + $0x2f8] sm:$0xff]
  %v204 = vpack.c.bf16 %v15, %v12
  %v205 = vpack.c.bf16 %v16, %v13
  %v206 = vpack.c.bf16 %v17, %v14
  %v207 = vpack.c.bf16 %v21, %v18
  %v208 = vpack.c.bf16 %v22, %v19
  %v209 = vpack.c.bf16 %v23, %v20
  %v210 = vpack.c.bf16 %v27, %v24
  %v211 = vpack.c.bf16 %v28, %v25
  %v212 = vpack.c.bf16 %v29, %v26
  %v213 = vpack.c.bf16 %v33, %v30
  %v214 = vpack.c.bf16 %v34, %v31
  %v215 = vpack.c.bf16 %v35, %v32
  %v216 = vpack.c.bf16 %v39, %v36
  %v217 = vpack.c.bf16 %v40, %v37
  %v218 = vpack.c.bf16 %v41, %v38
  %v219 = vpack.c.bf16 %v45, %v42
  %v220 = vpack.c.bf16 %v46, %v43
  %v221 = vpack.c.bf16 %v47, %v44
  %v222 = vpack.c.bf16 %v51, %v48
  %v223 = vpack.c.bf16 %v52, %v49
  %v224 = vpack.c.bf16 %v53, %v50
  %v225 = vpack.c.bf16 %v57, %v54
  %v226 = vpack.c.bf16 %v58, %v55
  %v227 = vpack.c.bf16 %v59, %v56
  %v228 = vpack.c.bf16 %v63, %v60
  %v229 = vpack.c.bf16 %v64, %v61
  %v230 = vpack.c.bf16 %v65, %v62
  %v231 = vpack.c.bf16 %v69, %v66
  %v232 = vpack.c.bf16 %v70, %v67
  %v233 = vpack.c.bf16 %v71, %v68
  %v234 = vpack.c.bf16 %v75, %v72
  %v235 = vpack.c.bf16 %v76, %v73
  %v236 = vpack.c.bf16 %v77, %v74
  %v237 = vpack.c.bf16 %v81, %v78
  %v238 = vpack.c.bf16 %v82, %v79
  %v239 = vpack.c.bf16 %v83, %v80
  %v240 = vpack.c.bf16 %v87, %v84
  %v241 = vpack.c.bf16 %v88, %v85
  %v242 = vpack.c.bf16 %v89, %v86
  %v243 = vpack.c.bf16 %v93, %v90
  %v244 = vpack.c.bf16 %v94, %v91
  %v245 = vpack.c.bf16 %v95, %v92
  %v246 = vpack.c.bf16 %v99, %v96
  %v247 = vpack.c.bf16 %v100, %v97
  %v248 = vpack.c.bf16 %v101, %v98
  %v249 = vpack.c.bf16 %v105, %v102
  %v250 = vpack.c.bf16 %v106, %v103
  %v251 = vpack.c.bf16 %v107, %v104
  %v252 = vpack.c.bf16 %v110, %v108
  %v253 = vpack.c.bf16 %v111, %v109
  %v254 = vpack.c.bf16 %v114, %v112
  %v255 = vpack.c.bf16 %v115, %v113
  %v256 = vpack.c.bf16 %v118, %v116
  %v257 = vpack.c.bf16 %v119, %v117
  %v258 = vpack.c.bf16 %v122, %v120
  %v259 = vpack.c.bf16 %v123, %v121
  %v260 = vpack.c.bf16 %v126, %v124
  %v261 = vpack.c.bf16 %v127, %v125
  %v262 = vpack.c.bf16 %v130, %v128
  %v263 = vpack.c.bf16 %v131, %v129
  %v264 = vpack.c.bf16 %v134, %v132
  %v265 = vpack.c.bf16 %v135, %v133
  %v266 = vpack.c.bf16 %v138, %v136
  %v267 = vpack.c.bf16 %v139, %v137
  %v268 = vpack.c.bf16 %v142, %v140
  %v269 = vpack.c.bf16 %v143, %v141
  %v270 = vpack.c.bf16 %v146, %v144
  %v271 = vpack.c.bf16 %v147, %v145
  %v272 = vpack.c.bf16 %v150, %v148
  %v273 = vpack.c.bf16 %v151, %v149
  %v274 = vpack.c.bf16 %v154, %v152
  %v275 = vpack.c.bf16 %v155, %v153
  %v276 = vpack.c.bf16 %v158, %v156
  %v277 = vpack.c.bf16 %v159, %v157
  %v278 = vpack.c.bf16 %v162, %v160
  %v279 = vpack.c.bf16 %v163, %v161
  %v280 = vpack.c.bf16 %v166, %v164
  %v281 = vpack.c.bf16 %v167, %v165
  %v282 = vpack.c.bf16 %v170, %v168
  %v283 = vpack.c.bf16 %v171, %v169
  %v284 = vpack.c.bf16 %v174, %v172
  %v285 = vpack.c.bf16 %v175, %v173
  %v286 = vpack.c.bf16 %v178, %v176
  %v287 = vpack.c.bf16 %v179, %v177
  %v288 = vpack.c.bf16 %v182, %v180
  %v289 = vpack.c.bf16 %v183, %v181
  %v290 = vpack.c.bf16 %v186, %v184
  %v291 = vpack.c.bf16 %v187, %v185
  %v292 = vpack.c.bf16 %v190, %v188
  %v293 = vpack.c.bf16 %v191, %v189
  %v294 = vpack.c.bf16 %v194, %v192
  %v295 = vpack.c.bf16 %v195, %v193
  %v296 = vpack.c.bf16 %v198, %v196
  %v297 = vpack.c.bf16 %v199, %v197
  %v298 = vpack.c.bf16 %v202, %v200
  %v299 = vpack.c.bf16 %v203, %v201
  %300 = vmatprep.subr.bf16.mxu0 %v267
  %301 = vmatpush1.bf16.msra.mxu0 %v266
  %302 = vmatprep.subr.bf16.mxu0 %v265
  %303 = vmatpush1.bf16.msra.mxu0 %v264
  %304 = vmatprep.subr.bf16.mxu0 %v263
  %305 = vmatpush1.bf16.msra.mxu0 %v262
  %306 = vmatprep.subr.bf16.mxu0 %v261
  %307 = vmatpush1.bf16.msra.mxu0 %v260
  %308 = vmatprep.subr.bf16.mxu0 %v259
  %309 = vmatpush1.bf16.msra.mxu0 %v258
  %310 = vmatprep.subr.bf16.mxu0 %v257
  %311 = vmatpush1.bf16.msra.mxu0 %v256
  %312 = vmatprep.subr.bf16.mxu0 %v255
  %313 = vmatpush1.bf16.msra.mxu0 %v254
  %314 = vmatprep.subr.bf16.mxu0 %v253
  %315 = vmatpush1.bf16.msra.mxu0 %v252
  %316 = vmatprep.subr.bf16.mxu0 %v283
  %317 = vmatpush2.bf16.msra.mxu0 %v282
  %318 = vmatprep.subr.bf16.mxu0 %v281
  %319 = vmatpush2.bf16.msra.mxu0 %v280
  %320 = vmatprep.subr.bf16.mxu0 %v279
  %321 = vmatpush2.bf16.msra.mxu0 %v278
  %322 = vmatprep.subr.bf16.mxu0 %v277
  %323 = vmatpush2.bf16.msra.mxu0 %v276
  %324 = vmatprep.subr.bf16.mxu0 %v275
  %325 = vmatpush2.bf16.msra.mxu0 %v274
  %326 = vmatprep.subr.bf16.mxu0 %v273
  %327 = vmatpush2.bf16.msra.mxu0 %v272
  %328 = vmatprep.subr.bf16.mxu0 %v271
  %329 = vmatpush2.bf16.msra.mxu0 %v270
  %330 = vmatprep.subr.bf16.mxu0 %v269
  %331 = vmatpush2.bf16.msra.mxu0 %v268
  %332 = vmatprep.mubr.bf16.mxu0 %v205
  %333 = vmatmul.mubr.bf16.gmra.mxu0 %v204
  %v334 = vpop.f32.mrf.mxu0
  %v335 = vadd.f32 0.0, %v334
  %v336 = vpop.f32.mrf.mxu0
  %v337 = vadd.f32 0.0, %v336
  %v338 = vpop.f32.mrf.mxu0
  %v339 = vadd.f32 0.0, %v338
  %v340 = vpop.f32.mrf.mxu0
  %v341 = vadd.f32 0.0, %v340
  %342 = vmatprep.mubr.bf16.mxu0 %v208
  %343 = vmatmul.mubr.bf16.gmra.mxu0 %v207
  %v344 = vpop.f32.mrf.mxu0
  %v345 = vadd.f32 0.0, %v344
  %v346 = vpop.f32.mrf.mxu0
  %v347 = vadd.f32 0.0, %v346
  %v348 = vpop.f32.mrf.mxu0
  %v349 = vadd.f32 0.0, %v348
  %v350 = vpop.f32.mrf.mxu0
  %v351 = vadd.f32 0.0, %v350
  %352 = vmatprep.mubr.bf16.mxu0 %v211
  %353 = vmatmul.mubr.bf16.gmra.mxu0 %v210
  %v354 = vpop.f32.mrf.mxu0
  %v355 = vadd.f32 0.0, %v354
  %v356 = vpop.f32.mrf.mxu0
  %v357 = vadd.f32 0.0, %v356
  %v358 = vpop.f32.mrf.mxu0
  %v359 = vadd.f32 0.0, %v358
  %v360 = vpop.f32.mrf.mxu0
  %v361 = vadd.f32 0.0, %v360
  %362 = vmatprep.mubr.bf16.mxu0 %v214
  %363 = vmatmul.mubr.bf16.gmra.mxu0 %v213
  %v364 = vpop.f32.mrf.mxu0
  %v365 = vadd.f32 0.0, %v364
  %v366 = vpop.f32.mrf.mxu0
  %v367 = vadd.f32 0.0, %v366
  %v368 = vpop.f32.mrf.mxu0
  %v369 = vadd.f32 0.0, %v368
  %v370 = vpop.f32.mrf.mxu0
  %v371 = vadd.f32 0.0, %v370
  %372 = vmatprep.mubr.bf16.mxu0 %v217
  %373 = vmatmul.mubr.bf16.gmra.mxu0 %v216
  %v374 = vpop.f32.mrf.mxu0
  %v375 = vadd.f32 0.0, %v374
  %v376 = vpop.f32.mrf.mxu0
  %v377 = vadd.f32 0.0, %v376
  %v378 = vpop.f32.mrf.mxu0
  %v379 = vadd.f32 0.0, %v378
  %v380 = vpop.f32.mrf.mxu0
  %v381 = vadd.f32 0.0, %v380
  %382 = vmatprep.mubr.bf16.mxu0 %v220
  %383 = vmatmul.mubr.bf16.gmra.mxu0 %v219
  %v384 = vpop.f32.mrf.mxu0
  %v385 = vadd.f32 0.0, %v384
  %v386 = vpop.f32.mrf.mxu0
  %v387 = vadd.f32 0.0, %v386
  %v388 = vpop.f32.mrf.mxu0
  %v389 = vadd.f32 0.0, %v388
  %v390 = vpop.f32.mrf.mxu0
  %v391 = vadd.f32 0.0, %v390
  %392 = vmatprep.mubr.bf16.mxu0 %v223
  %393 = vmatmul.mubr.bf16.gmra.mxu0 %v222
  %v394 = vpop.f32.mrf.mxu0
  %v395 = vadd.f32 0.0, %v394
  %v396 = vpop.f32.mrf.mxu0
  %v397 = vadd.f32 0.0, %v396
  %v398 = vpop.f32.mrf.mxu0
  %v399 = vadd.f32 0.0, %v398
  %v400 = vpop.f32.mrf.mxu0
  %v401 = vadd.f32 0.0, %v400
  %402 = vmatprep.mubr.bf16.mxu0 %v226
  %403 = vmatmul.mubr.bf16.gmra.mxu0 %v225
  %v404 = vpop.f32.mrf.mxu0
  %v405 = vadd.f32 0.0, %v404
  %v406 = vpop.f32.mrf.mxu0
  %v407 = vadd.f32 0.0, %v406
  %v408 = vpop.f32.mrf.mxu0
  %v409 = vadd.f32 0.0, %v408
  %v410 = vpop.f32.mrf.mxu0
  %v411 = vadd.f32 0.0, %v410
  %412 = vmatprep.mubr.bf16.mxu0 %v229
  %413 = vmatmul.mubr.bf16.gmra.mxu0 %v228
  %v414 = vpop.f32.mrf.mxu0
  %v415 = vadd.f32 0.0, %v414
  %v416 = vpop.f32.mrf.mxu0
  %v417 = vadd.f32 0.0, %v416
  %v418 = vpop.f32.mrf.mxu0
  %v419 = vadd.f32 0.0, %v418
  %v420 = vpop.f32.mrf.mxu0
  %v421 = vadd.f32 0.0, %v420
  %422 = vmatprep.mubr.bf16.mxu0 %v232
  %423 = vmatmul.mubr.bf16.gmra.mxu0 %v231
  %v424 = vpop.f32.mrf.mxu0
  %v425 = vadd.f32 0.0, %v424
  %v426 = vpop.f32.mrf.mxu0
  %v427 = vadd.f32 0.0, %v426
  %v428 = vpop.f32.mrf.mxu0
  %v429 = vadd.f32 0.0, %v428
  %v430 = vpop.f32.mrf.mxu0
  %v431 = vadd.f32 0.0, %v430
  %432 = vmatprep.mubr.bf16.mxu0 %v235
  %433 = vmatmul.mubr.bf16.gmra.mxu0 %v234
  %v434 = vpop.f32.mrf.mxu0
  %v435 = vadd.f32 0.0, %v434
  %v436 = vpop.f32.mrf.mxu0
  %v437 = vadd.f32 0.0, %v436
  %v438 = vpop.f32.mrf.mxu0
  %v439 = vadd.f32 0.0, %v438
  %v440 = vpop.f32.mrf.mxu0
  %v441 = vadd.f32 0.0, %v440
  %442 = vmatprep.mubr.bf16.mxu0 %v238
  %443 = vmatmul.mubr.bf16.gmra.mxu0 %v237
  %v444 = vpop.f32.mrf.mxu0
  %v445 = vadd.f32 0.0, %v444
  %v446 = vpop.f32.mrf.mxu0
  %v447 = vadd.f32 0.0, %v446
  %v448 = vpop.f32.mrf.mxu0
  %v449 = vadd.f32 0.0, %v448
  %v450 = vpop.f32.mrf.mxu0
  %v451 = vadd.f32 0.0, %v450
  %452 = vmatprep.mubr.bf16.mxu0 %v241
  %453 = vmatmul.mubr.bf16.gmra.mxu0 %v240
  %v454 = vpop.f32.mrf.mxu0
  %v455 = vadd.f32 0.0, %v454
  %v456 = vpop.f32.mrf.mxu0
  %v457 = vadd.f32 0.0, %v456
  %v458 = vpop.f32.mrf.mxu0
  %v459 = vadd.f32 0.0, %v458
  %v460 = vpop.f32.mrf.mxu0
  %v461 = vadd.f32 0.0, %v460
  %462 = vmatprep.mubr.bf16.mxu0 %v244
  %463 = vmatmul.mubr.bf16.gmra.mxu0 %v243
  %v464 = vpop.f32.mrf.mxu0
  %v465 = vadd.f32 0.0, %v464
  %v466 = vpop.f32.mrf.mxu0
  %v467 = vadd.f32 0.0, %v466
  %v468 = vpop.f32.mrf.mxu0
  %v469 = vadd.f32 0.0, %v468
  %v470 = vpop.f32.mrf.mxu0
  %v471 = vadd.f32 0.0, %v470
  %472 = vmatprep.mubr.bf16.mxu0 %v247
  %473 = vmatmul.mubr.bf16.gmra.mxu0 %v246
  %v474 = vpop.f32.mrf.mxu0
  %v475 = vadd.f32 0.0, %v474
  %v476 = vpop.f32.mrf.mxu0
  %v477 = vadd.f32 0.0, %v476
  %v478 = vpop.f32.mrf.mxu0
  %v479 = vadd.f32 0.0, %v478
  %v480 = vpop.f32.mrf.mxu0
  %v481 = vadd.f32 0.0, %v480
  %482 = vmatprep.mubr.bf16.mxu0 %v250
  %483 = vmatmul.mubr.bf16.gmra.mxu0 %v249
  %v484 = vpop.f32.mrf.mxu0
  %v485 = vadd.f32 0.0, %v484
  %v486 = vpop.f32.mrf.mxu0
  %v487 = vadd.f32 0.0, %v486
  %v488 = vpop.f32.mrf.mxu0
  %v489 = vadd.f32 0.0, %v488
  %v490 = vpop.f32.mrf.mxu0
  %v491 = vadd.f32 0.0, %v490
  %492 = vdwg.mxu0
  %493 = vmatprep.subr.bf16.mxu0 %v299
  %494 = vmatpush1.bf16.msra.mxu0 %v298
  %495 = vmatprep.subr.bf16.mxu0 %v297
  %496 = vmatpush1.bf16.msra.mxu0 %v296
  %497 = vmatprep.subr.bf16.mxu0 %v295
  %498 = vmatpush1.bf16.msra.mxu0 %v294
  %499 = vmatprep.subr.bf16.mxu0 %v293
  %500 = vmatpush1.bf16.msra.mxu0 %v292
  %501 = vmatprep.subr.bf16.mxu0 %v291
  %502 = vmatpush1.bf16.msra.mxu0 %v290
  %503 = vmatprep.subr.bf16.mxu0 %v289
  %504 = vmatpush1.bf16.msra.mxu0 %v288
  %505 = vmatprep.subr.bf16.mxu0 %v287
  %506 = vmatpush1.bf16.msra.mxu0 %v286
  %507 = vmatprep.subr.bf16.mxu0 %v285
  %508 = vmatpush1.bf16.msra.mxu0 %v284
  %509 = vmatprep.subr.bf16.mxu0 0
  %510 = vmatpush2.bf16.msra.mxu0 0
  %511 = vmatprep.subr.bf16.mxu0 0
  %512 = vmatpush2.bf16.msra.mxu0 0
  %513 = vmatprep.subr.bf16.mxu0 0
  %514 = vmatpush2.bf16.msra.mxu0 0
  %515 = vmatprep.subr.bf16.mxu0 0
  %516 = vmatpush2.bf16.msra.mxu0 0
  %517 = vmatprep.subr.bf16.mxu0 0
  %518 = vmatpush2.bf16.msra.mxu0 0
  %519 = vmatprep.subr.bf16.mxu0 0
  %520 = vmatpush2.bf16.msra.mxu0 0
  %521 = vmatprep.subr.bf16.mxu0 0
  %522 = vmatpush2.bf16.msra.mxu0 0
  %523 = vmatprep.subr.bf16.mxu0 0
  %524 = vmatpush2.bf16.msra.mxu0 0
  %525 = vmatprep.mubr.bf16.mxu0 0
  %526 = vmatmul.mubr.bf16.gmra.mxu0 %v206
  %v527 = vpop.f32.mrf.mxu0
  %v528 = vadd.f32 %v335, %v527
  %v529 = vpop.f32.mrf.mxu0
  %v530 = vadd.f32 %v337, %v529
  %v531 = vpop.f32.mrf.mxu0
  %v532 = vadd.f32 %v339, %v531
  %v533 = vpop.f32.mrf.mxu0
  %v534 = vadd.f32 %v341, %v533
  %535 = vmatprep.mubr.bf16.mxu0 0
  %536 = vmatmul.mubr.bf16.gmra.mxu0 %v209
  %v537 = vpop.f32.mrf.mxu0
  %v538 = vadd.f32 %v345, %v537
  %v539 = vpop.f32.mrf.mxu0
  %v540 = vadd.f32 %v347, %v539
  %v541 = vpop.f32.mrf.mxu0
  %v542 = vadd.f32 %v349, %v541
  %v543 = vpop.f32.mrf.mxu0
  %v544 = vadd.f32 %v351, %v543
  %545 = vmatprep.mubr.bf16.mxu0 0
  %546 = vmatmul.mubr.bf16.gmra.mxu0 %v212
  %v547 = vpop.f32.mrf.mxu0
  %v548 = vadd.f32 %v355, %v547
  %v549 = vpop.f32.mrf.mxu0
  %v550 = vadd.f32 %v357, %v549
  %v551 = vpop.f32.mrf.mxu0
  %v552 = vadd.f32 %v359, %v551
  %v553 = vpop.f32.mrf.mxu0
  %v554 = vadd.f32 %v361, %v553
  %555 = vmatprep.mubr.bf16.mxu0 0
  %556 = vmatmul.mubr.bf16.gmra.mxu0 %v215
  %v557 = vpop.f32.mrf.mxu0
  %v558 = vadd.f32 %v365, %v557
  %v559 = vpop.f32.mrf.mxu0
  %v560 = vadd.f32 %v367, %v559
  %v561 = vpop.f32.mrf.mxu0
  %v562 = vadd.f32 %v369, %v561
  %v563 = vpop.f32.mrf.mxu0
  %v564 = vadd.f32 %v371, %v563
  %565 = vmatprep.mubr.bf16.mxu0 0
  %566 = vmatmul.mubr.bf16.gmra.mxu0 %v218
  %v567 = vpop.f32.mrf.mxu0
  %v568 = vadd.f32 %v375, %v567
  %v569 = vpop.f32.mrf.mxu0
  %v570 = vadd.f32 %v377, %v569
  %v571 = vpop.f32.mrf.mxu0
  %v572 = vadd.f32 %v379, %v571
  %v573 = vpop.f32.mrf.mxu0
  %v574 = vadd.f32 %v381, %v573
  %575 = vmatprep.mubr.bf16.mxu0 0
  %576 = vmatmul.mubr.bf16.gmra.mxu0 %v221
  %v577 = vpop.f32.mrf.mxu0
  %v578 = vadd.f32 %v385, %v577
  %v579 = vpop.f32.mrf.mxu0
  %v580 = vadd.f32 %v387, %v579
  %v581 = vpop.f32.mrf.mxu0
  %v582 = vadd.f32 %v389, %v581
  %v583 = vpop.f32.mrf.mxu0
  %v584 = vadd.f32 %v391, %v583
  %585 = vmatprep.mubr.bf16.mxu0 0
  %586 = vmatmul.mubr.bf16.gmra.mxu0 %v224
  %v587 = vpop.f32.mrf.mxu0
  %v588 = vadd.f32 %v395, %v587
  %v589 = vpop.f32.mrf.mxu0
  %v590 = vadd.f32 %v397, %v589
  %v591 = vpop.f32.mrf.mxu0
  %v592 = vadd.f32 %v399, %v591
  %v593 = vpop.f32.mrf.mxu0
  %v594 = vadd.f32 %v401, %v593
  %595 = vmatprep.mubr.bf16.mxu0 0
  %596 = vmatmul.mubr.bf16.gmra.mxu0 %v227
  %v597 = vpop.f32.mrf.mxu0
  %v598 = vadd.f32 %v405, %v597
  %v599 = vpop.f32.mrf.mxu0
  %v600 = vadd.f32 %v407, %v599
  %v601 = vpop.f32.mrf.mxu0
  %v602 = vadd.f32 %v409, %v601
  %v603 = vpop.f32.mrf.mxu0
  %v604 = vadd.f32 %v411, %v603
  %605 = vmatprep.mubr.bf16.mxu0 0
  %606 = vmatmul.mubr.bf16.gmra.mxu0 %v230
  %v607 = vpop.f32.mrf.mxu0
  %v608 = vadd.f32 %v415, %v607
  %v609 = vpop.f32.mrf.mxu0
  %v610 = vadd.f32 %v417, %v609
  %v611 = vpop.f32.mrf.mxu0
  %v612 = vadd.f32 %v419, %v611
  %v613 = vpop.f32.mrf.mxu0
  %v614 = vadd.f32 %v421, %v613
  %615 = vmatprep.mubr.bf16.mxu0 0
  %616 = vmatmul.mubr.bf16.gmra.mxu0 %v233
  %v617 = vpop.f32.mrf.mxu0
  %v618 = vadd.f32 %v425, %v617
  %v619 = vpop.f32.mrf.mxu0
  %v620 = vadd.f32 %v427, %v619
  %v621 = vpop.f32.mrf.mxu0
  %v622 = vadd.f32 %v429, %v621
  %v623 = vpop.f32.mrf.mxu0
  %v624 = vadd.f32 %v431, %v623
  %625 = vmatprep.mubr.bf16.mxu0 0
  %626 = vmatmul.mubr.bf16.gmra.mxu0 %v236
  %v627 = vpop.f32.mrf.mxu0
  %v628 = vadd.f32 %v435, %v627
  %v629 = vpop.f32.mrf.mxu0
  %v630 = vadd.f32 %v437, %v629
  %v631 = vpop.f32.mrf.mxu0
  %v632 = vadd.f32 %v439, %v631
  %v633 = vpop.f32.mrf.mxu0
  %v634 = vadd.f32 %v441, %v633
  %635 = vmatprep.mubr.bf16.mxu0 0
  %636 = vmatmul.mubr.bf16.gmra.mxu0 %v239
  %v637 = vpop.f32.mrf.mxu0
  %v638 = vadd.f32 %v445, %v637
  %v639 = vpop.f32.mrf.mxu0
  %v640 = vadd.f32 %v447, %v639
  %v641 = vpop.f32.mrf.mxu0
  %v642 = vadd.f32 %v449, %v641
  %v643 = vpop.f32.mrf.mxu0
  %v644 = vadd.f32 %v451, %v643
  %645 = vmatprep.mubr.bf16.mxu0 0
  %646 = vmatmul.mubr.bf16.gmra.mxu0 %v242
  %v647 = vpop.f32.mrf.mxu0
  %v648 = vadd.f32 %v455, %v647
  %v649 = vpop.f32.mrf.mxu0
  %v650 = vadd.f32 %v457, %v649
  %v651 = vpop.f32.mrf.mxu0
  %v652 = vadd.f32 %v459, %v651
  %v653 = vpop.f32.mrf.mxu0
  %v654 = vadd.f32 %v461, %v653
  %655 = vmatprep.mubr.bf16.mxu0 0
  %656 = vmatmul.mubr.bf16.gmra.mxu0 %v245
  %v657 = vpop.f32.mrf.mxu0
  %v658 = vadd.f32 %v465, %v657
  %v659 = vpop.f32.mrf.mxu0
  %v660 = vadd.f32 %v467, %v659
  %v661 = vpop.f32.mrf.mxu0
  %v662 = vadd.f32 %v469, %v661
  %v663 = vpop.f32.mrf.mxu0
  %v664 = vadd.f32 %v471, %v663
  %665 = vmatprep.mubr.bf16.mxu0 0
  %666 = vmatmul.mubr.bf16.gmra.mxu0 %v248
  %v667 = vpop.f32.mrf.mxu0
  %v668 = vadd.f32 %v475, %v667
  %v669 = vpop.f32.mrf.mxu0
  %v670 = vadd.f32 %v477, %v669
  %v671 = vpop.f32.mrf.mxu0
  %v672 = vadd.f32 %v479, %v671
  %v673 = vpop.f32.mrf.mxu0
  %v674 = vadd.f32 %v481, %v673
  %675 = vmatprep.mubr.bf16.mxu0 0
  %676 = vmatmul.mubr.bf16.gmra.mxu0 %v251
  %v677 = vpop.f32.mrf.mxu0
  %v678 = vadd.f32 %v485, %v677
  %v679 = vpop.f32.mrf.mxu0
  %v680 = vadd.f32 %v487, %v679
  %v681 = vpop.f32.mrf.mxu0
  %v682 = vadd.f32 %v489, %v681
  %v683 = vpop.f32.mrf.mxu0
  %v684 = vadd.f32 %v491, %v683
  %685 = vdwg.mxu0
  %v686 = vmul.f32 %v528, 0.125
  %v687 = vmul.f32 %v532, 0.125
  %v688 = vmul.f32 %v538, 0.125
  %v689 = vmul.f32 %v542, 0.125
  %v690 = vmul.f32 %v548, 0.125
  %v691 = vmul.f32 %v552, 0.125
  %v692 = vmul.f32 %v558, 0.125
  %v693 = vmul.f32 %v562, 0.125
  %v694 = vmul.f32 %v568, 0.125
  %v695 = vmul.f32 %v572, 0.125
  %v696 = vmul.f32 %v578, 0.125
  %v697 = vmul.f32 %v582, 0.125
  %v698 = vmul.f32 %v588, 0.125
  %v699 = vmul.f32 %v592, 0.125
  %v700 = vmul.f32 %v598, 0.125
  %v701 = vmul.f32 %v602, 0.125
  %v702 = vmul.f32 %v608, 0.125
  %v703 = vmul.f32 %v612, 0.125
  %v704 = vmul.f32 %v618, 0.125
  %v705 = vmul.f32 %v622, 0.125
  %v706 = vmul.f32 %v628, 0.125
  %v707 = vmul.f32 %v632, 0.125
  %v708 = vmul.f32 %v638, 0.125
  %v709 = vmul.f32 %v642, 0.125
  %v710 = vmul.f32 %v648, 0.125
  %v711 = vmul.f32 %v652, 0.125
  %v712 = vmul.f32 %v658, 0.125
  %v713 = vmul.f32 %v662, 0.125
  %v714 = vmul.f32 %v668, 0.125
  %v715 = vmul.f32 %v672, 0.125
  %v716 = vmul.f32 %v678, 0.125
  %v717 = vmul.f32 %v682, 0.125
  %v718 = vpack.c.bf16 %v687, %v686
  %v719 = vpack.c.bf16 %v689, %v688
  %v720 = vpack.c.bf16 %v691, %v690
  %v721 = vpack.c.bf16 %v693, %v692
  %v722 = vpack.c.bf16 %v695, %v694
  %v723 = vpack.c.bf16 %v697, %v696
  %v724 = vpack.c.bf16 %v699, %v698
  %v725 = vpack.c.bf16 %v701, %v700
  %v726 = vpack.c.bf16 %v703, %v702
  %v727 = vpack.c.bf16 %v705, %v704
  %v728 = vpack.c.bf16 %v707, %v706
  %v729 = vpack.c.bf16 %v709, %v708
  %v730 = vpack.c.bf16 %v711, %v710
  %v731 = vpack.c.bf16 %v713, %v712
  %v732 = vpack.c.bf16 %v715, %v714
  %v733 = vpack.c.bf16 %v717, %v716
  %v734 = vpack.c.bf16 %v532, %v528
  %v735 = vpack.c.bf16 %v542, %v538
  %v736 = vpack.c.bf16 %v552, %v548
  %v737 = vpack.c.bf16 %v562, %v558
  %v738 = vpack.c.bf16 %v572, %v568
  %v739 = vpack.c.bf16 %v582, %v578
  %v740 = vpack.c.bf16 %v592, %v588
  %v741 = vpack.c.bf16 %v602, %v598
  %v742 = vpack.c.bf16 %v612, %v608
  %v743 = vpack.c.bf16 %v622, %v618
  %v744 = vpack.c.bf16 %v632, %v628
  %v745 = vpack.c.bf16 %v642, %v638
  %v746 = vpack.c.bf16 %v652, %v648
  %v747 = vpack.c.bf16 %v662, %v658
  %v748 = vpack.c.bf16 %v672, %v668
  %v749 = vpack.c.bf16 %v682, %v678
  %758 = vrot.lane.b32.xlu0 %v734, 64
  %v759 = vpop.permute.xlu0 %758
  %760 = vrot.lane.b32.xlu0 %v735, 64
  %v761 = vpop.permute.xlu0 %760
  %762 = vrot.lane.b32.xlu0 %v736, 64
  %v763 = vpop.permute.xlu0 %762
  %764 = vrot.lane.b32.xlu0 %v737, 64
  %v765 = vpop.permute.xlu0 %764
  %766 = vrot.lane.b32.xlu0 %v738, 64
  %v767 = vpop.permute.xlu0 %766
  %768 = vrot.lane.b32.xlu0 %v739, 64
  %v769 = vpop.permute.xlu0 %768
  %770 = vrot.lane.b32.xlu0 %v740, 64
  %v771 = vpop.permute.xlu0 %770
  %772 = vrot.lane.b32.xlu0 %v741, 64
  %v773 = vpop.permute.xlu0 %772
  %vm774 = vcmask 523264
  %v776 = vsel %vm774, %v718, 0
  %v779 = vsel %vm774, %v719, 0
  %v782 = vsel %vm774, %v720, 0
  %v785 = vsel %vm774, %v721, 0
  %v788 = vsel %vm774, %v722, 0
  %v791 = vsel %vm774, %v723, 0
  %v794 = vsel %vm774, %v724, 0
  %v797 = vsel %vm774, %v725, 0
  %v800 = vsel %vm774, %v759, 0
  %v803 = vsel %vm774, %v761, 0
  %v806 = vsel %vm774, %v763, 0
  %v809 = vsel %vm774, %v765, 0
  %v812 = vsel %vm774, %v767, 0
  %v815 = vsel %vm774, %v769, 0
  %v818 = vsel %vm774, %v771, 0
  %v821 = vsel %vm774, %v773, 0
  %823 = vmatprep.subr.bf16.mxu0 0
  %824 = vmatpush1.bf16.xpose.msra.mxu0 %v821
  %825 = vmatprep.subr.bf16.mxu0 0
  %826 = vmatpush1.bf16.xpose.msra.mxu0 %v818
  %827 = vmatprep.subr.bf16.mxu0 0
  %828 = vmatpush1.bf16.xpose.msra.mxu0 %v815
  %829 = vmatprep.subr.bf16.mxu0 0
  %830 = vmatpush1.bf16.xpose.msra.mxu0 %v812
  %831 = vmatprep.subr.bf16.mxu0 0
  %832 = vmatpush1.bf16.xpose.msra.mxu0 %v809
  %833 = vmatprep.subr.bf16.mxu0 0
  %834 = vmatpush1.bf16.xpose.msra.mxu0 %v806
  %835 = vmatprep.subr.bf16.mxu0 0
  %836 = vmatpush1.bf16.xpose.msra.mxu0 %v803
  %837 = vmatprep.subr.bf16.mxu0 0
  %838 = vmatpush1.bf16.xpose.msra.mxu0 %v800
  %839 = vmatprep.subr.bf16.mxu0 0
  %840 = vmatpush2.bf16.xpose.msra.mxu0 0
  %841 = vmatprep.subr.bf16.mxu0 0
  %842 = vmatpush2.bf16.xpose.msra.mxu0 0
  %843 = vmatprep.subr.bf16.mxu0 0
  %844 = vmatpush2.bf16.xpose.msra.mxu0 0
  %845 = vmatprep.subr.bf16.mxu0 0
  %846 = vmatpush2.bf16.xpose.msra.mxu0 0
  %847 = vmatprep.subr.bf16.mxu0 0
  %848 = vmatpush2.bf16.xpose.msra.mxu0 0
  %849 = vmatprep.subr.bf16.mxu0 0
  %850 = vmatpush2.bf16.xpose.msra.mxu0 0
  %851 = vmatprep.subr.bf16.mxu0 0
  %852 = vmatpush2.bf16.xpose.msra.mxu0 0
  %853 = vmatprep.subr.bf16.mxu0 0
  %854 = vmatpush2.bf16.xpose.msra.mxu0 0
  %855 = vmatprep.mubr.bf16.mxu0 0
  %856 = vmatmul.mubr.bf16.gmra.mxu0 %v776
  %v857 = vpop.f32.mrf.mxu0
  %v858 = vadd.f32 0.0, %v857
  %v859 = vpop.f32.mrf.mxu0
  %v860 = vpop.f32.mrf.mxu0
  %v861 = vadd.f32 0.0, %v860
  %v862 = vpop.f32.mrf.mxu0
  %863 = vmatprep.mubr.bf16.mxu0 0
  %864 = vmatmul.mubr.bf16.gmra.mxu0 %v779
  %v865 = vpop.f32.mrf.mxu0
  %v866 = vadd.f32 0.0, %v865
  %v867 = vpop.f32.mrf.mxu0
  %v868 = vpop.f32.mrf.mxu0
  %v869 = vadd.f32 0.0, %v868
  %v870 = vpop.f32.mrf.mxu0
  %871 = vmatprep.mubr.bf16.mxu0 0
  %872 = vmatmul.mubr.bf16.gmra.mxu0 %v782
  %v873 = vpop.f32.mrf.mxu0
  %v874 = vadd.f32 0.0, %v873
  %v875 = vpop.f32.mrf.mxu0
  %v876 = vpop.f32.mrf.mxu0
  %v877 = vadd.f32 0.0, %v876
  %v878 = vpop.f32.mrf.mxu0
  %879 = vmatprep.mubr.bf16.mxu0 0
  %880 = vmatmul.mubr.bf16.gmra.mxu0 %v785
  %v881 = vpop.f32.mrf.mxu0
  %v882 = vadd.f32 0.0, %v881
  %v883 = vpop.f32.mrf.mxu0
  %v884 = vpop.f32.mrf.mxu0
  %v885 = vadd.f32 0.0, %v884
  %v886 = vpop.f32.mrf.mxu0
  %887 = vmatprep.mubr.bf16.mxu0 0
  %888 = vmatmul.mubr.bf16.gmra.mxu0 %v788
  %v889 = vpop.f32.mrf.mxu0
  %v890 = vadd.f32 0.0, %v889
  %v891 = vpop.f32.mrf.mxu0
  %v892 = vpop.f32.mrf.mxu0
  %v893 = vadd.f32 0.0, %v892
  %v894 = vpop.f32.mrf.mxu0
  %895 = vmatprep.mubr.bf16.mxu0 0
  %896 = vmatmul.mubr.bf16.gmra.mxu0 %v791
  %v897 = vpop.f32.mrf.mxu0
  %v898 = vadd.f32 0.0, %v897
  %v899 = vpop.f32.mrf.mxu0
  %v900 = vpop.f32.mrf.mxu0
  %v901 = vadd.f32 0.0, %v900
  %v902 = vpop.f32.mrf.mxu0
  %903 = vmatprep.mubr.bf16.mxu0 0
  %904 = vmatmul.mubr.bf16.gmra.mxu0 %v794
  %v905 = vpop.f32.mrf.mxu0
  %v906 = vadd.f32 0.0, %v905
  %v907 = vpop.f32.mrf.mxu0
  %v908 = vpop.f32.mrf.mxu0
  %v909 = vadd.f32 0.0, %v908
  %v910 = vpop.f32.mrf.mxu0
  %911 = vmatprep.mubr.bf16.mxu0 0
  %912 = vmatmul.mubr.bf16.gmra.mxu0 %v797
  %v913 = vpop.f32.mrf.mxu0
  %v914 = vadd.f32 0.0, %v913
  %v915 = vpop.f32.mrf.mxu0
  %v916 = vpop.f32.mrf.mxu0
  %v917 = vadd.f32 0.0, %v916
  %v918 = vpop.f32.mrf.mxu0
  %919 = vdwg.mxu0
  %928 = vrot.lane.b32.xlu0 %v742, 64
  %v929 = vpop.permute.xlu0 %928
  %930 = vrot.lane.b32.xlu0 %v743, 64
  %v931 = vpop.permute.xlu0 %930
  %932 = vrot.lane.b32.xlu0 %v744, 64
  %v933 = vpop.permute.xlu0 %932
  %934 = vrot.lane.b32.xlu0 %v745, 64
  %v935 = vpop.permute.xlu0 %934
  %936 = vrot.lane.b32.xlu0 %v746, 64
  %v937 = vpop.permute.xlu0 %936
  %938 = vrot.lane.b32.xlu0 %v747, 64
  %v939 = vpop.permute.xlu0 %938
  %940 = vrot.lane.b32.xlu0 %v748, 64
  %v941 = vpop.permute.xlu0 %940
  %942 = vrot.lane.b32.xlu0 %v749, 64
  %v943 = vpop.permute.xlu0 %942
  %v945 = vsel %vm774, %v726, 0
  %v948 = vsel %vm774, %v727, 0
  %v951 = vsel %vm774, %v728, 0
  %v954 = vsel %vm774, %v729, 0
  %v957 = vsel %vm774, %v730, 0
  %v960 = vsel %vm774, %v731, 0
  %v963 = vsel %vm774, %v732, 0
  %v966 = vsel %vm774, %v733, 0
  %v969 = vsel %vm774, %v929, 0
  %v972 = vsel %vm774, %v931, 0
  %v975 = vsel %vm774, %v933, 0
  %v978 = vsel %vm774, %v935, 0
  %v981 = vsel %vm774, %v937, 0
  %v984 = vsel %vm774, %v939, 0
  %v987 = vsel %vm774, %v941, 0
  %v990 = vsel %vm774, %v943, 0
  %992 = vmatprep.subr.bf16.mxu0 0
  %993 = vmatpush1.bf16.xpose.msra.mxu0 %v990
  %994 = vmatprep.subr.bf16.mxu0 0
  %995 = vmatpush1.bf16.xpose.msra.mxu0 %v987
  %996 = vmatprep.subr.bf16.mxu0 0
  %997 = vmatpush1.bf16.xpose.msra.mxu0 %v984
  %998 = vmatprep.subr.bf16.mxu0 0
  %999 = vmatpush1.bf16.xpose.msra.mxu0 %v981
  %1000 = vmatprep.subr.bf16.mxu0 0
  %1001 = vmatpush1.bf16.xpose.msra.mxu0 %v978
  %1002 = vmatprep.subr.bf16.mxu0 0
  %1003 = vmatpush1.bf16.xpose.msra.mxu0 %v975
  %1004 = vmatprep.subr.bf16.mxu0 0
  %1005 = vmatpush1.bf16.xpose.msra.mxu0 %v972
  %1006 = vmatprep.subr.bf16.mxu0 0
  %1007 = vmatpush1.bf16.xpose.msra.mxu0 %v969
  %1008 = vmatprep.subr.bf16.mxu0 0
  %1009 = vmatpush2.bf16.xpose.msra.mxu0 0
  %1010 = vmatprep.subr.bf16.mxu0 0
  %1011 = vmatpush2.bf16.xpose.msra.mxu0 0
  %1012 = vmatprep.subr.bf16.mxu0 0
  %1013 = vmatpush2.bf16.xpose.msra.mxu0 0
  %1014 = vmatprep.subr.bf16.mxu0 0
  %1015 = vmatpush2.bf16.xpose.msra.mxu0 0
  %1016 = vmatprep.subr.bf16.mxu0 0
  %1017 = vmatpush2.bf16.xpose.msra.mxu0 0
  %1018 = vmatprep.subr.bf16.mxu0 0
  %1019 = vmatpush2.bf16.xpose.msra.mxu0 0
  %1020 = vmatprep.subr.bf16.mxu0 0
  %1021 = vmatpush2.bf16.xpose.msra.mxu0 0
  %1022 = vmatprep.subr.bf16.mxu0 0
  %1023 = vmatpush2.bf16.xpose.msra.mxu0 0
  %1024 = vmatprep.mubr.bf16.mxu0 0
  %1025 = vmatmul.mubr.bf16.gmra.mxu0 %v945
  %v1026 = vpop.f32.mrf.mxu0
  %v1027 = vadd.f32 0.0, %v1026
  %v1028 = vpop.f32.mrf.mxu0
  %v1029 = vpop.f32.mrf.mxu0
  %v1030 = vadd.f32 0.0, %v1029
  %v1031 = vpop.f32.mrf.mxu0
  %1032 = vmatprep.mubr.bf16.mxu0 0
  %1033 = vmatmul.mubr.bf16.gmra.mxu0 %v948
  %v1034 = vpop.f32.mrf.mxu0
  %v1035 = vadd.f32 0.0, %v1034
  %v1036 = vpop.f32.mrf.mxu0
  %v1037 = vpop.f32.mrf.mxu0
  %v1038 = vadd.f32 0.0, %v1037
  %v1039 = vpop.f32.mrf.mxu0
  %1040 = vmatprep.mubr.bf16.mxu0 0
  %1041 = vmatmul.mubr.bf16.gmra.mxu0 %v951
  %v1042 = vpop.f32.mrf.mxu0
  %v1043 = vadd.f32 0.0, %v1042
  %v1044 = vpop.f32.mrf.mxu0
  %v1045 = vpop.f32.mrf.mxu0
  %v1046 = vadd.f32 0.0, %v1045
  %v1047 = vpop.f32.mrf.mxu0
  %1048 = vmatprep.mubr.bf16.mxu0 0
  %1049 = vmatmul.mubr.bf16.gmra.mxu0 %v954
  %v1050 = vpop.f32.mrf.mxu0
  %v1051 = vadd.f32 0.0, %v1050
  %v1052 = vpop.f32.mrf.mxu0
  %v1053 = vpop.f32.mrf.mxu0
  %v1054 = vadd.f32 0.0, %v1053
  %v1055 = vpop.f32.mrf.mxu0
  %1056 = vmatprep.mubr.bf16.mxu0 0
  %1057 = vmatmul.mubr.bf16.gmra.mxu0 %v957
  %v1058 = vpop.f32.mrf.mxu0
  %v1059 = vadd.f32 0.0, %v1058
  %v1060 = vpop.f32.mrf.mxu0
  %v1061 = vpop.f32.mrf.mxu0
  %v1062 = vadd.f32 0.0, %v1061
  %v1063 = vpop.f32.mrf.mxu0
  %1064 = vmatprep.mubr.bf16.mxu0 0
  %1065 = vmatmul.mubr.bf16.gmra.mxu0 %v960
  %v1066 = vpop.f32.mrf.mxu0
  %v1067 = vadd.f32 0.0, %v1066
  %v1068 = vpop.f32.mrf.mxu0
  %v1069 = vpop.f32.mrf.mxu0
  %v1070 = vadd.f32 0.0, %v1069
  %v1071 = vpop.f32.mrf.mxu0
  %1072 = vmatprep.mubr.bf16.mxu0 0
  %1073 = vmatmul.mubr.bf16.gmra.mxu0 %v963
  %v1074 = vpop.f32.mrf.mxu0
  %v1075 = vadd.f32 0.0, %v1074
  %v1076 = vpop.f32.mrf.mxu0
  %v1077 = vpop.f32.mrf.mxu0
  %v1078 = vadd.f32 0.0, %v1077
  %v1079 = vpop.f32.mrf.mxu0
  %1080 = vmatprep.mubr.bf16.mxu0 0
  %1081 = vmatmul.mubr.bf16.gmra.mxu0 %v966
  %v1082 = vpop.f32.mrf.mxu0
  %v1083 = vadd.f32 0.0, %v1082
  %v1084 = vpop.f32.mrf.mxu0
  %v1085 = vpop.f32.mrf.mxu0
  %v1086 = vadd.f32 0.0, %v1085
  %v1087 = vpop.f32.mrf.mxu0
  %1088 = vdwg.mxu0
  %v1089 = vlaneseq
  %v1090 = vshrl.u32 %v1089, 7
  %v1091 = vadd.s32 %v1090, 8
  %v1092 = vadd.s32 %v1090, 16
  %v1093 = vadd.s32 %v1090, 24
  %v1094 = vadd.s32 %v1090, 32
  %v1095 = vadd.s32 %v1090, 40
  %v1096 = vadd.s32 %v1090, 48
  %v1097 = vadd.s32 %v1090, 56
  %v1098 = vadd.s32 %v1090, 64
  %v1099 = vadd.s32 %v1090, 72
  %v1100 = vadd.s32 %v1090, 80
  %v1101 = vadd.s32 %v1090, 88
  %v1102 = vadd.s32 %v1090, 96
  %v1103 = vadd.s32 %v1090, 104
  %v1104 = vadd.s32 %v1090, 112
  %v1105 = vadd.s32 %v1090, 120
  %v1106 = vlaneseq
  %v1107 = vand.u32 %v1106, 127
  %vm1108 = vcmp.le.s32.totalorder %v1107, %v1090
  %vm1109 = vcmp.le.s32.totalorder %v1107, %v1091
  %vm1110 = vcmp.le.s32.totalorder %v1107, %v1092
  %vm1111 = vcmp.le.s32.totalorder %v1107, %v1093
  %vm1112 = vcmp.le.s32.totalorder %v1107, %v1094
  %vm1113 = vcmp.le.s32.totalorder %v1107, %v1095
  %vm1114 = vcmp.le.s32.totalorder %v1107, %v1096
  %vm1115 = vcmp.le.s32.totalorder %v1107, %v1097
  %vm1116 = vcmp.le.s32.totalorder %v1107, %v1098
  %vm1117 = vcmp.le.s32.totalorder %v1107, %v1099
  %vm1118 = vcmp.le.s32.totalorder %v1107, %v1100
  %vm1119 = vcmp.le.s32.totalorder %v1107, %v1101
  %vm1120 = vcmp.le.s32.totalorder %v1107, %v1102
  %vm1121 = vcmp.le.s32.totalorder %v1107, %v1103
  %vm1122 = vcmp.le.s32.totalorder %v1107, %v1104
  %vm1123 = vcmp.le.s32.totalorder %v1107, %v1105
  %v1124 = vsel %vm1108, 1, 0
  %v1125 = vsel %vm1109, 1, 0
  %v1126 = vsel %vm1110, 1, 0
  %v1127 = vsel %vm1111, 1, 0
  %v1128 = vsel %vm1112, 1, 0
  %v1129 = vsel %vm1113, 1, 0
  %v1130 = vsel %vm1114, 1, 0
  %v1131 = vsel %vm1115, 1, 0
  %v1132 = vsel %vm1116, 1, 0
  %v1133 = vsel %vm1117, 1, 0
  %v1134 = vsel %vm1118, 1, 0
  %v1135 = vsel %vm1119, 1, 0
  %v1136 = vsel %vm1120, 1, 0
  %v1137 = vsel %vm1121, 1, 0
  %v1138 = vsel %vm1122, 1, 0
  %v1139 = vsel %vm1123, 1, 0
  %vm1140 = vcmp.eq.s32.totalorder %v1124, 1
  %vm1141 = vcmp.eq.s32.totalorder %v1125, 1
  %vm1142 = vcmp.eq.s32.totalorder %v1126, 1
  %vm1143 = vcmp.eq.s32.totalorder %v1127, 1
  %vm1144 = vcmp.eq.s32.totalorder %v1128, 1
  %vm1145 = vcmp.eq.s32.totalorder %v1129, 1
  %vm1146 = vcmp.eq.s32.totalorder %v1130, 1
  %vm1147 = vcmp.eq.s32.totalorder %v1131, 1
  %vm1148 = vcmp.eq.s32.totalorder %v1132, 1
  %vm1149 = vcmp.eq.s32.totalorder %v1133, 1
  %vm1150 = vcmp.eq.s32.totalorder %v1134, 1
  %vm1151 = vcmp.eq.s32.totalorder %v1135, 1
  %vm1152 = vcmp.eq.s32.totalorder %v1136, 1
  %vm1153 = vcmp.eq.s32.totalorder %v1137, 1
  %vm1154 = vcmp.eq.s32.totalorder %v1138, 1
  %vm1155 = vcmp.eq.s32.totalorder %v1139, 1
  %v1156 = vsel %vm1140, %v858, -inf
  %v1157 = vsel %vm1141, %v861, -inf
  %v1158 = vsel %vm1142, %v866, -inf
  %v1159 = vsel %vm1143, %v869, -inf
  %v1160 = vsel %vm1144, %v874, -inf
  %v1161 = vsel %vm1145, %v877, -inf
  %v1162 = vsel %vm1146, %v882, -inf
  %v1163 = vsel %vm1147, %v885, -inf
  %v1164 = vsel %vm1148, %v890, -inf
  %v1165 = vsel %vm1149, %v893, -inf
  %v1166 = vsel %vm1150, %v898, -inf
  %v1167 = vsel %vm1151, %v901, -inf
  %v1168 = vsel %vm1152, %v906, -inf
  %v1169 = vsel %vm1153, %v909, -inf
  %v1170 = vsel %vm1154, %v914, -inf
  %v1171 = vsel %vm1155, %v917, -inf
  %v1172 = vsel %vm1140, %v1027, -inf
  %v1173 = vsel %vm1141, %v1030, -inf
  %v1174 = vsel %vm1142, %v1035, -inf
  %v1175 = vsel %vm1143, %v1038, -inf
  %v1176 = vsel %vm1144, %v1043, -inf
  %v1177 = vsel %vm1145, %v1046, -inf
  %v1178 = vsel %vm1146, %v1051, -inf
  %v1179 = vsel %vm1147, %v1054, -inf
  %v1180 = vsel %vm1148, %v1059, -inf
  %v1181 = vsel %vm1149, %v1062, -inf
  %v1182 = vsel %vm1150, %v1067, -inf
  %v1183 = vsel %vm1151, %v1070, -inf
  %v1184 = vsel %vm1152, %v1075, -inf
  %v1185 = vsel %vm1153, %v1078, -inf
  %v1186 = vsel %vm1154, %v1083, -inf
  %v1187 = vsel %vm1155, %v1086, -inf
  %1188 = vmax.xlane.f32.xlu0 %v1156
  %v1189 = vpop.xlane.xlu0 %1188
  %1190 = vmax.xlane.f32.xlu0 %v1157
  %v1191 = vpop.xlane.xlu0 %1190
  %1192 = vmax.xlane.f32.xlu0 %v1158
  %v1193 = vpop.xlane.xlu0 %1192
  %1194 = vmax.xlane.f32.xlu0 %v1159
  %v1195 = vpop.xlane.xlu0 %1194
  %1196 = vmax.xlane.f32.xlu0 %v1160
  %v1197 = vpop.xlane.xlu0 %1196
  %1198 = vmax.xlane.f32.xlu0 %v1161
  %v1199 = vpop.xlane.xlu0 %1198
  %1200 = vmax.xlane.f32.xlu0 %v1162
  %v1201 = vpop.xlane.xlu0 %1200
  %1202 = vmax.xlane.f32.xlu0 %v1163
  %v1203 = vpop.xlane.xlu0 %1202
  %1204 = vmax.xlane.f32.xlu0 %v1164
  %v1205 = vpop.xlane.xlu0 %1204
  %1206 = vmax.xlane.f32.xlu0 %v1165
  %v1207 = vpop.xlane.xlu0 %1206
  %1208 = vmax.xlane.f32.xlu0 %v1166
  %v1209 = vpop.xlane.xlu0 %1208
  %1210 = vmax.xlane.f32.xlu0 %v1167
  %v1211 = vpop.xlane.xlu0 %1210
  %1212 = vmax.xlane.f32.xlu0 %v1168
  %v1213 = vpop.xlane.xlu0 %1212
  %1214 = vmax.xlane.f32.xlu0 %v1169
  %v1215 = vpop.xlane.xlu0 %1214
  %1216 = vmax.xlane.f32.xlu0 %v1170
  %v1217 = vpop.xlane.xlu0 %1216
  %1218 = vmax.xlane.f32.xlu0 %v1171
  %v1219 = vpop.xlane.xlu0 %1218
  %1220 = vmax.xlane.f32.xlu0 %v1172
  %v1221 = vpop.xlane.xlu0 %1220
  %1222 = vmax.xlane.f32.xlu0 %v1173
  %v1223 = vpop.xlane.xlu0 %1222
  %1224 = vmax.xlane.f32.xlu0 %v1174
  %v1225 = vpop.xlane.xlu0 %1224
  %1226 = vmax.xlane.f32.xlu0 %v1175
  %v1227 = vpop.xlane.xlu0 %1226
  %1228 = vmax.xlane.f32.xlu0 %v1176
  %v1229 = vpop.xlane.xlu0 %1228
  %1230 = vmax.xlane.f32.xlu0 %v1177
  %v1231 = vpop.xlane.xlu0 %1230
  %1232 = vmax.xlane.f32.xlu0 %v1178
  %v1233 = vpop.xlane.xlu0 %1232
  %1234 = vmax.xlane.f32.xlu0 %v1179
  %v1235 = vpop.xlane.xlu0 %1234
  %1236 = vmax.xlane.f32.xlu0 %v1180
  %v1237 = vpop.xlane.xlu0 %1236
  %1238 = vmax.xlane.f32.xlu0 %v1181
  %v1239 = vpop.xlane.xlu0 %1238
  %1240 = vmax.xlane.f32.xlu0 %v1182
  %v1241 = vpop.xlane.xlu0 %1240
  %1242 = vmax.xlane.f32.xlu0 %v1183
  %v1243 = vpop.xlane.xlu0 %1242
  %1244 = vmax.xlane.f32.xlu0 %v1184
  %v1245 = vpop.xlane.xlu0 %1244
  %1246 = vmax.xlane.f32.xlu0 %v1185
  %v1247 = vpop.xlane.xlu0 %1246
  %1248 = vmax.xlane.f32.xlu0 %v1186
  %v1249 = vpop.xlane.xlu0 %1248
  %1250 = vmax.xlane.f32.xlu0 %v1187
  %v1251 = vpop.xlane.xlu0 %1250
  %v1252 = vsub.f32 %v1156, %v1189
  %v1253 = vsub.f32 %v1157, %v1191
  %v1254 = vsub.f32 %v1158, %v1193
  %v1255 = vsub.f32 %v1159, %v1195
  %v1256 = vsub.f32 %v1160, %v1197
  %v1257 = vsub.f32 %v1161, %v1199
  %v1258 = vsub.f32 %v1162, %v1201
  %v1259 = vsub.f32 %v1163, %v1203
  %v1260 = vsub.f32 %v1164, %v1205
  %v1261 = vsub.f32 %v1165, %v1207
  %v1262 = vsub.f32 %v1166, %v1209
  %v1263 = vsub.f32 %v1167, %v1211
  %v1264 = vsub.f32 %v1168, %v1213
  %v1265 = vsub.f32 %v1169, %v1215
  %v1266 = vsub.f32 %v1170, %v1217
  %v1267 = vsub.f32 %v1171, %v1219
  %v1268 = vsub.f32 %v1172, %v1221
  %v1269 = vsub.f32 %v1173, %v1223
  %v1270 = vsub.f32 %v1174, %v1225
  %v1271 = vsub.f32 %v1175, %v1227
  %v1272 = vsub.f32 %v1176, %v1229
  %v1273 = vsub.f32 %v1177, %v1231
  %v1274 = vsub.f32 %v1178, %v1233
  %v1275 = vsub.f32 %v1179, %v1235
  %v1276 = vsub.f32 %v1180, %v1237
  %v1277 = vsub.f32 %v1181, %v1239
  %v1278 = vsub.f32 %v1182, %v1241
  %v1279 = vsub.f32 %v1183, %v1243
  %v1280 = vsub.f32 %v1184, %v1245
  %v1281 = vsub.f32 %v1185, %v1247
  %v1282 = vsub.f32 %v1186, %v1249
  %v1283 = vsub.f32 %v1187, %v1251
  %v1284 = vmul.f32 %v1252, 1.442695
  %v1285 = vpow.pop %v1284
  %v1286 = vmul.f32 %v1253, 1.442695
  %v1287 = vpow.pop %v1286
  %v1288 = vmul.f32 %v1254, 1.442695
  %v1289 = vpow.pop %v1288
  %v1290 = vmul.f32 %v1255, 1.442695
  %v1291 = vpow.pop %v1290
  %v1292 = vmul.f32 %v1256, 1.442695
  %v1293 = vpow.pop %v1292
  %v1294 = vmul.f32 %v1257, 1.442695
  %v1295 = vpow.pop %v1294
  %v1296 = vmul.f32 %v1258, 1.442695
  %v1297 = vpow.pop %v1296
  %v1298 = vmul.f32 %v1259, 1.442695
  %v1299 = vpow.pop %v1298
  %v1300 = vmul.f32 %v1260, 1.442695
  %v1301 = vpow.pop %v1300
  %v1302 = vmul.f32 %v1261, 1.442695
  %v1303 = vpow.pop %v1302
  %v1304 = vmul.f32 %v1262, 1.442695
  %v1305 = vpow.pop %v1304
  %v1306 = vmul.f32 %v1263, 1.442695
  %v1307 = vpow.pop %v1306
  %v1308 = vmul.f32 %v1264, 1.442695
  %v1309 = vpow.pop %v1308
  %v1310 = vmul.f32 %v1265, 1.442695
  %v1311 = vpow.pop %v1310
  %v1312 = vmul.f32 %v1266, 1.442695
  %v1313 = vpow.pop %v1312
  %v1314 = vmul.f32 %v1267, 1.442695
  %v1315 = vpow.pop %v1314
  %v1316 = vmul.f32 %v1268, 1.442695
  %v1317 = vpow.pop %v1316
  %v1318 = vmul.f32 %v1269, 1.442695
  %v1319 = vpow.pop %v1318
  %v1320 = vmul.f32 %v1270, 1.442695
  %v1321 = vpow.pop %v1320
  %v1322 = vmul.f32 %v1271, 1.442695
  %v1323 = vpow.pop %v1322
  %v1324 = vmul.f32 %v1272, 1.442695
  %v1325 = vpow.pop %v1324
  %v1326 = vmul.f32 %v1273, 1.442695
  %v1327 = vpow.pop %v1326
  %v1328 = vmul.f32 %v1274, 1.442695
  %v1329 = vpow.pop %v1328
  %v1330 = vmul.f32 %v1275, 1.442695
  %v1331 = vpow.pop %v1330
  %v1332 = vmul.f32 %v1276, 1.442695
  %v1333 = vpow.pop %v1332
  %v1334 = vmul.f32 %v1277, 1.442695
  %v1335 = vpow.pop %v1334
  %v1336 = vmul.f32 %v1278, 1.442695
  %v1337 = vpow.pop %v1336
  %v1338 = vmul.f32 %v1279, 1.442695
  %v1339 = vpow.pop %v1338
  %v1340 = vmul.f32 %v1280, 1.442695
  %v1341 = vpow.pop %v1340
  %v1342 = vmul.f32 %v1281, 1.442695
  %v1343 = vpow.pop %v1342
  %v1344 = vmul.f32 %v1282, 1.442695
  %v1345 = vpow.pop %v1344
  %v1346 = vmul.f32 %v1283, 1.442695
  %v1347 = vpow.pop %v1346
  %1348 = vadd.xlane.f32.xlu0 %v1285
  %v1349 = vpop.xlane.xlu0 %1348
  %1350 = vadd.xlane.f32.xlu0 %v1287
  %v1351 = vpop.xlane.xlu0 %1350
  %1352 = vadd.xlane.f32.xlu0 %v1289
  %v1353 = vpop.xlane.xlu0 %1352
  %1354 = vadd.xlane.f32.xlu0 %v1291
  %v1355 = vpop.xlane.xlu0 %1354
  %1356 = vadd.xlane.f32.xlu0 %v1293
  %v1357 = vpop.xlane.xlu0 %1356
  %1358 = vadd.xlane.f32.xlu0 %v1295
  %v1359 = vpop.xlane.xlu0 %1358
  %1360 = vadd.xlane.f32.xlu0 %v1297
  %v1361 = vpop.xlane.xlu0 %1360
  %1362 = vadd.xlane.f32.xlu0 %v1299
  %v1363 = vpop.xlane.xlu0 %1362
  %1364 = vadd.xlane.f32.xlu0 %v1301
  %v1365 = vpop.xlane.xlu0 %1364
  %1366 = vadd.xlane.f32.xlu0 %v1303
  %v1367 = vpop.xlane.xlu0 %1366
  %1368 = vadd.xlane.f32.xlu0 %v1305
  %v1369 = vpop.xlane.xlu0 %1368
  %1370 = vadd.xlane.f32.xlu0 %v1307
  %v1371 = vpop.xlane.xlu0 %1370
  %1372 = vadd.xlane.f32.xlu0 %v1309
  %v1373 = vpop.xlane.xlu0 %1372
  %1374 = vadd.xlane.f32.xlu0 %v1311
  %v1375 = vpop.xlane.xlu0 %1374
  %1376 = vadd.xlane.f32.xlu0 %v1313
  %v1377 = vpop.xlane.xlu0 %1376
  %1378 = vadd.xlane.f32.xlu0 %v1315
  %v1379 = vpop.xlane.xlu0 %1378
  %1380 = vadd.xlane.f32.xlu0 %v1317
  %v1381 = vpop.xlane.xlu0 %1380
  %1382 = vadd.xlane.f32.xlu0 %v1319
  %v1383 = vpop.xlane.xlu0 %1382
  %1384 = vadd.xlane.f32.xlu0 %v1321
  %v1385 = vpop.xlane.xlu0 %1384
  %1386 = vadd.xlane.f32.xlu0 %v1323
  %v1387 = vpop.xlane.xlu0 %1386
  %1388 = vadd.xlane.f32.xlu0 %v1325
  %v1389 = vpop.xlane.xlu0 %1388
  %1390 = vadd.xlane.f32.xlu0 %v1327
  %v1391 = vpop.xlane.xlu0 %1390
  %1392 = vadd.xlane.f32.xlu0 %v1329
  %v1393 = vpop.xlane.xlu0 %1392
  %1394 = vadd.xlane.f32.xlu0 %v1331
  %v1395 = vpop.xlane.xlu0 %1394
  %1396 = vadd.xlane.f32.xlu0 %v1333
  %v1397 = vpop.xlane.xlu0 %1396
  %1398 = vadd.xlane.f32.xlu0 %v1335
  %v1399 = vpop.xlane.xlu0 %1398
  %1400 = vadd.xlane.f32.xlu0 %v1337
  %v1401 = vpop.xlane.xlu0 %1400
  %1402 = vadd.xlane.f32.xlu0 %v1339
  %v1403 = vpop.xlane.xlu0 %1402
  %1404 = vadd.xlane.f32.xlu0 %v1341
  %v1405 = vpop.xlane.xlu0 %1404
  %1406 = vadd.xlane.f32.xlu0 %v1343
  %v1407 = vpop.xlane.xlu0 %1406
  %1408 = vadd.xlane.f32.xlu0 %v1345
  %v1409 = vpop.xlane.xlu0 %1408
  %1410 = vadd.xlane.f32.xlu0 %v1347
  %v1411 = vpop.xlane.xlu0 %1410
  %v1412 = vrcp.pop %v1349
  %v1413 = vrcp.pop %v1351
  %v1414 = vrcp.pop %v1353
  %v1415 = vrcp.pop %v1355
  %v1416 = vrcp.pop %v1357
  %v1417 = vrcp.pop %v1359
  %v1418 = vrcp.pop %v1361
  %v1419 = vrcp.pop %v1363
  %v1420 = vrcp.pop %v1365
  %v1421 = vrcp.pop %v1367
  %v1422 = vrcp.pop %v1369
  %v1423 = vrcp.pop %v1371
  %v1424 = vrcp.pop %v1373
  %v1425 = vrcp.pop %v1375
  %v1426 = vrcp.pop %v1377
  %v1427 = vrcp.pop %v1379
  %v1428 = vrcp.pop %v1381
  %v1429 = vrcp.pop %v1383
  %v1430 = vrcp.pop %v1385
  %v1431 = vrcp.pop %v1387
  %v1432 = vrcp.pop %v1389
  %v1433 = vrcp.pop %v1391
  %v1434 = vrcp.pop %v1393
  %v1435 = vrcp.pop %v1395
  %v1436 = vrcp.pop %v1397
  %v1437 = vrcp.pop %v1399
  %v1438 = vrcp.pop %v1401
  %v1439 = vrcp.pop %v1403
  %v1440 = vrcp.pop %v1405
  %v1441 = vrcp.pop %v1407
  %v1442 = vrcp.pop %v1409
  %v1443 = vrcp.pop %v1411
  %v1444 = vmul.f32 %v1285, %v1412
  %v1445 = vmul.f32 %v1287, %v1413
  %v1446 = vmul.f32 %v1289, %v1414
  %v1447 = vmul.f32 %v1291, %v1415
  %v1448 = vmul.f32 %v1293, %v1416
  %v1449 = vmul.f32 %v1295, %v1417
  %v1450 = vmul.f32 %v1297, %v1418
  %v1451 = vmul.f32 %v1299, %v1419
  %v1452 = vmul.f32 %v1301, %v1420
  %v1453 = vmul.f32 %v1303, %v1421
  %v1454 = vmul.f32 %v1305, %v1422
  %v1455 = vmul.f32 %v1307, %v1423
  %v1456 = vmul.f32 %v1309, %v1424
  %v1457 = vmul.f32 %v1311, %v1425
  %v1458 = vmul.f32 %v1313, %v1426
  %v1459 = vmul.f32 %v1315, %v1427
  %v1460 = vmul.f32 %v1317, %v1428
  %v1461 = vmul.f32 %v1319, %v1429
  %v1462 = vmul.f32 %v1321, %v1430
  %v1463 = vmul.f32 %v1323, %v1431
  %v1464 = vmul.f32 %v1325, %v1432
  %v1465 = vmul.f32 %v1327, %v1433
  %v1466 = vmul.f32 %v1329, %v1434
  %v1467 = vmul.f32 %v1331, %v1435
  %v1468 = vmul.f32 %v1333, %v1436
  %v1469 = vmul.f32 %v1335, %v1437
  %v1470 = vmul.f32 %v1337, %v1438
  %v1471 = vmul.f32 %v1339, %v1439
  %v1472 = vmul.f32 %v1341, %v1440
  %v1473 = vmul.f32 %v1343, %v1441
  %v1474 = vmul.f32 %v1345, %v1442
  %v1475 = vmul.f32 %v1347, %v1443
  %v1476 = vpack.c.bf16 %v1445, %v1444
  %v1477 = vpack.c.bf16 %v1447, %v1446
  %v1478 = vpack.c.bf16 %v1449, %v1448
  %v1479 = vpack.c.bf16 %v1451, %v1450
  %v1480 = vpack.c.bf16 %v1453, %v1452
  %v1481 = vpack.c.bf16 %v1455, %v1454
  %v1482 = vpack.c.bf16 %v1457, %v1456
  %v1483 = vpack.c.bf16 %v1459, %v1458
  %v1484 = vpack.c.bf16 %v1461, %v1460
  %v1485 = vpack.c.bf16 %v1463, %v1462
  %v1486 = vpack.c.bf16 %v1465, %v1464
  %v1487 = vpack.c.bf16 %v1467, %v1466
  %v1488 = vpack.c.bf16 %v1469, %v1468
  %v1489 = vpack.c.bf16 %v1471, %v1470
  %v1490 = vpack.c.bf16 %v1473, %v1472
  %v1491 = vpack.c.bf16 %v1475, %v1474
  %v1492 = vpack.c.bf16 %v534, %v530
  %v1493 = vpack.c.bf16 %v544, %v540
  %v1494 = vpack.c.bf16 %v554, %v550
  %v1495 = vpack.c.bf16 %v564, %v560
  %v1496 = vpack.c.bf16 %v574, %v570
  %v1497 = vpack.c.bf16 %v584, %v580
  %v1498 = vpack.c.bf16 %v594, %v590
  %v1499 = vpack.c.bf16 %v604, %v600
  %v1500 = vpack.c.bf16 %v614, %v610
  %v1501 = vpack.c.bf16 %v624, %v620
  %v1502 = vpack.c.bf16 %v634, %v630
  %v1503 = vpack.c.bf16 %v644, %v640
  %v1504 = vpack.c.bf16 %v654, %v650
  %v1505 = vpack.c.bf16 %v664, %v660
  %v1506 = vpack.c.bf16 %v674, %v670
  %v1507 = vpack.c.bf16 %v684, %v680
  %1508 = vmatprep.subr.bf16.mxu0 0
  %1509 = vmatpush1.bf16.msra.mxu0 %v1499
  %1510 = vmatprep.subr.bf16.mxu0 0
  %1511 = vmatpush1.bf16.msra.mxu0 %v1498
  %1512 = vmatprep.subr.bf16.mxu0 0
  %1513 = vmatpush1.bf16.msra.mxu0 %v1497
  %1514 = vmatprep.subr.bf16.mxu0 0
  %1515 = vmatpush1.bf16.msra.mxu0 %v1496
  %1516 = vmatprep.subr.bf16.mxu0 0
  %1517 = vmatpush1.bf16.msra.mxu0 %v1495
  %1518 = vmatprep.subr.bf16.mxu0 0
  %1519 = vmatpush1.bf16.msra.mxu0 %v1494
  %1520 = vmatprep.subr.bf16.mxu0 0
  %1521 = vmatpush1.bf16.msra.mxu0 %v1493
  %1522 = vmatprep.subr.bf16.mxu0 0
  %1523 = vmatpush1.bf16.msra.mxu0 %v1492
  %1524 = vmatprep.subr.bf16.mxu0 0
  %1525 = vmatpush2.bf16.msra.mxu0 0
  %1526 = vmatprep.subr.bf16.mxu0 0
  %1527 = vmatpush2.bf16.msra.mxu0 0
  %1528 = vmatprep.subr.bf16.mxu0 0
  %1529 = vmatpush2.bf16.msra.mxu0 0
  %1530 = vmatprep.subr.bf16.mxu0 0
  %1531 = vmatpush2.bf16.msra.mxu0 0
  %1532 = vmatprep.subr.bf16.mxu0 0
  %1533 = vmatpush2.bf16.msra.mxu0 0
  %1534 = vmatprep.subr.bf16.mxu0 0
  %1535 = vmatpush2.bf16.msra.mxu0 0
  %1536 = vmatprep.subr.bf16.mxu0 0
  %1537 = vmatpush2.bf16.msra.mxu0 0
  %1538 = vmatprep.subr.bf16.mxu0 0
  %1539 = vmatpush2.bf16.msra.mxu0 0
  %1540 = vmatprep.mubr.bf16.mxu0 0
  %1541 = vmatmul.mubr.bf16.gmra.mxu0 %v1476
  %v1542 = vpop.f32.mrf.mxu0
  %v1543 = vadd.f32 0.0, %v1542
  %v1544 = vpop.f32.mrf.mxu0
  %v1545 = vpop.f32.mrf.mxu0
  %v1546 = vadd.f32 0.0, %v1545
  %v1547 = vpop.f32.mrf.mxu0
  %1548 = vmatprep.mubr.bf16.mxu0 0
  %1549 = vmatmul.mubr.bf16.gmra.mxu0 %v1477
  %v1550 = vpop.f32.mrf.mxu0
  %v1551 = vadd.f32 0.0, %v1550
  %v1552 = vpop.f32.mrf.mxu0
  %v1553 = vpop.f32.mrf.mxu0
  %v1554 = vadd.f32 0.0, %v1553
  %v1555 = vpop.f32.mrf.mxu0
  %1556 = vmatprep.mubr.bf16.mxu0 0
  %1557 = vmatmul.mubr.bf16.gmra.mxu0 %v1478
  %v1558 = vpop.f32.mrf.mxu0
  %v1559 = vadd.f32 0.0, %v1558
  %v1560 = vpop.f32.mrf.mxu0
  %v1561 = vpop.f32.mrf.mxu0
  %v1562 = vadd.f32 0.0, %v1561
  %v1563 = vpop.f32.mrf.mxu0
  %1564 = vmatprep.mubr.bf16.mxu0 0
  %1565 = vmatmul.mubr.bf16.gmra.mxu0 %v1479
  %v1566 = vpop.f32.mrf.mxu0
  %v1567 = vadd.f32 0.0, %v1566
  %v1568 = vpop.f32.mrf.mxu0
  %v1569 = vpop.f32.mrf.mxu0
  %v1570 = vadd.f32 0.0, %v1569
  %v1571 = vpop.f32.mrf.mxu0
  %1572 = vmatprep.mubr.bf16.mxu0 0
  %1573 = vmatmul.mubr.bf16.gmra.mxu0 %v1480
  %v1574 = vpop.f32.mrf.mxu0
  %v1575 = vadd.f32 0.0, %v1574
  %v1576 = vpop.f32.mrf.mxu0
  %v1577 = vpop.f32.mrf.mxu0
  %v1578 = vadd.f32 0.0, %v1577
  %v1579 = vpop.f32.mrf.mxu0
  %1580 = vmatprep.mubr.bf16.mxu0 0
  %1581 = vmatmul.mubr.bf16.gmra.mxu0 %v1481
  %v1582 = vpop.f32.mrf.mxu0
  %v1583 = vadd.f32 0.0, %v1582
  %v1584 = vpop.f32.mrf.mxu0
  %v1585 = vpop.f32.mrf.mxu0
  %v1586 = vadd.f32 0.0, %v1585
  %v1587 = vpop.f32.mrf.mxu0
  %1588 = vmatprep.mubr.bf16.mxu0 0
  %1589 = vmatmul.mubr.bf16.gmra.mxu0 %v1482
  %v1590 = vpop.f32.mrf.mxu0
  %v1591 = vadd.f32 0.0, %v1590
  %v1592 = vpop.f32.mrf.mxu0
  %v1593 = vpop.f32.mrf.mxu0
  %v1594 = vadd.f32 0.0, %v1593
  %v1595 = vpop.f32.mrf.mxu0
  %1596 = vmatprep.mubr.bf16.mxu0 0
  %1597 = vmatmul.mubr.bf16.gmra.mxu0 %v1483
  %v1598 = vpop.f32.mrf.mxu0
  %v1599 = vadd.f32 0.0, %v1598
  %v1600 = vpop.f32.mrf.mxu0
  %v1601 = vpop.f32.mrf.mxu0
  %v1602 = vadd.f32 0.0, %v1601
  %v1603 = vpop.f32.mrf.mxu0
  %1604 = vdwg.mxu0
  %1605 = vmatprep.subr.bf16.mxu0 0
  %1606 = vmatpush1.bf16.msra.mxu0 %v1507
  %1607 = vmatprep.subr.bf16.mxu0 0
  %1608 = vmatpush1.bf16.msra.mxu0 %v1506
  %1609 = vmatprep.subr.bf16.mxu0 0
  %1610 = vmatpush1.bf16.msra.mxu0 %v1505
  %1611 = vmatprep.subr.bf16.mxu0 0
  %1612 = vmatpush1.bf16.msra.mxu0 %v1504
  %1613 = vmatprep.subr.bf16.mxu0 0
  %1614 = vmatpush1.bf16.msra.mxu0 %v1503
  %1615 = vmatprep.subr.bf16.mxu0 0
  %1616 = vmatpush1.bf16.msra.mxu0 %v1502
  %1617 = vmatprep.subr.bf16.mxu0 0
  %1618 = vmatpush1.bf16.msra.mxu0 %v1501
  %1619 = vmatprep.subr.bf16.mxu0 0
  %1620 = vmatpush1.bf16.msra.mxu0 %v1500
  %1621 = vmatprep.subr.bf16.mxu0 0
  %1622 = vmatpush2.bf16.msra.mxu0 0
  %1623 = vmatprep.subr.bf16.mxu0 0
  %1624 = vmatpush2.bf16.msra.mxu0 0
  %1625 = vmatprep.subr.bf16.mxu0 0
  %1626 = vmatpush2.bf16.msra.mxu0 0
  %1627 = vmatprep.subr.bf16.mxu0 0
  %1628 = vmatpush2.bf16.msra.mxu0 0
  %1629 = vmatprep.subr.bf16.mxu0 0
  %1630 = vmatpush2.bf16.msra.mxu0 0
  %1631 = vmatprep.subr.bf16.mxu0 0
  %1632 = vmatpush2.bf16.msra.mxu0 0
  %1633 = vmatprep.subr.bf16.mxu0 0
  %1634 = vmatpush2.bf16.msra.mxu0 0
  %1635 = vmatprep.subr.bf16.mxu0 0
  %1636 = vmatpush2.bf16.msra.mxu0 0
  %1637 = vmatprep.mubr.bf16.mxu0 0
  %1638 = vmatmul.mubr.bf16.gmra.mxu0 %v1484
  %v1639 = vpop.f32.mrf.mxu0
  %v1640 = vadd.f32 0.0, %v1639
  %v1641 = vpop.f32.mrf.mxu0
  %v1642 = vpop.f32.mrf.mxu0
  %v1643 = vadd.f32 0.0, %v1642
  %v1644 = vpop.f32.mrf.mxu0
  %1645 = vmatprep.mubr.bf16.mxu0 0
  %1646 = vmatmul.mubr.bf16.gmra.mxu0 %v1485
  %v1647 = vpop.f32.mrf.mxu0
  %v1648 = vadd.f32 0.0, %v1647
  %v1649 = vpop.f32.mrf.mxu0
  %v1650 = vpop.f32.mrf.mxu0
  %v1651 = vadd.f32 0.0, %v1650
  %v1652 = vpop.f32.mrf.mxu0
  %1653 = vmatprep.mubr.bf16.mxu0 0
  %1654 = vmatmul.mubr.bf16.gmra.mxu0 %v1486
  %v1655 = vpop.f32.mrf.mxu0
  %v1656 = vadd.f32 0.0, %v1655
  %v1657 = vpop.f32.mrf.mxu0
  %v1658 = vpop.f32.mrf.mxu0
  %v1659 = vadd.f32 0.0, %v1658
  %v1660 = vpop.f32.mrf.mxu0
  %1661 = vmatprep.mubr.bf16.mxu0 0
  %1662 = vmatmul.mubr.bf16.gmra.mxu0 %v1487
  %v1663 = vpop.f32.mrf.mxu0
  %v1664 = vadd.f32 0.0, %v1663
  %v1665 = vpop.f32.mrf.mxu0
  %v1666 = vpop.f32.mrf.mxu0
  %v1667 = vadd.f32 0.0, %v1666
  %v1668 = vpop.f32.mrf.mxu0
  %1669 = vmatprep.mubr.bf16.mxu0 0
  %1670 = vmatmul.mubr.bf16.gmra.mxu0 %v1488
  %v1671 = vpop.f32.mrf.mxu0
  %v1672 = vadd.f32 0.0, %v1671
  %v1673 = vpop.f32.mrf.mxu0
  %v1674 = vpop.f32.mrf.mxu0
  %v1675 = vadd.f32 0.0, %v1674
  %v1676 = vpop.f32.mrf.mxu0
  %1677 = vmatprep.mubr.bf16.mxu0 0
  %1678 = vmatmul.mubr.bf16.gmra.mxu0 %v1489
  %v1679 = vpop.f32.mrf.mxu0
  %v1680 = vadd.f32 0.0, %v1679
  %v1681 = vpop.f32.mrf.mxu0
  %v1682 = vpop.f32.mrf.mxu0
  %v1683 = vadd.f32 0.0, %v1682
  %v1684 = vpop.f32.mrf.mxu0
  %1685 = vmatprep.mubr.bf16.mxu0 0
  %1686 = vmatmul.mubr.bf16.gmra.mxu0 %v1490
  %v1687 = vpop.f32.mrf.mxu0
  %v1688 = vadd.f32 0.0, %v1687
  %v1689 = vpop.f32.mrf.mxu0
  %v1690 = vpop.f32.mrf.mxu0
  %v1691 = vadd.f32 0.0, %v1690
  %v1692 = vpop.f32.mrf.mxu0
  %1693 = vmatprep.mubr.bf16.mxu0 0
  %1694 = vmatmul.mubr.bf16.gmra.mxu0 %v1491
  %v1695 = vpop.f32.mrf.mxu0
  %v1696 = vadd.f32 0.0, %v1695
  %v1697 = vpop.f32.mrf.mxu0
  %v1698 = vpop.f32.mrf.mxu0
  %v1699 = vadd.f32 0.0, %v1698
  %v1700 = vpop.f32.mrf.mxu0
  %1701 = vdwg.mxu0
  %1702 = vst.msk [vmem:[%s2] sm:$0xff] %vm774, %v1543
  %1703 = vst.msk [vmem:[%s2 + $0x8] sm:$0xff] %vm774, %v1546
  %1704 = vst.msk [vmem:[%s2 + $0x10] sm:$0xff] %vm774, %v1551
  %1705 = vst.msk [vmem:[%s2 + $0x18] sm:$0xff] %vm774, %v1554
  %1706 = vst.msk [vmem:[%s2 + $0x20] sm:$0xff] %vm774, %v1559
  %1707 = vst.msk [vmem:[%s2 + $0x28] sm:$0xff] %vm774, %v1562
  %1708 = vst.msk [vmem:[%s2 + $0x30] sm:$0xff] %vm774, %v1567
  %1709 = vst.msk [vmem:[%s2 + $0x38] sm:$0xff] %vm774, %v1570
  %1710 = vst.msk [vmem:[%s2 + $0x40] sm:$0xff] %vm774, %v1575
  %1711 = vst.msk [vmem:[%s2 + $0x48] sm:$0xff] %vm774, %v1578
  %1712 = vst.msk [vmem:[%s2 + $0x50] sm:$0xff] %vm774, %v1583
  %1713 = vst.msk [vmem:[%s2 + $0x58] sm:$0xff] %vm774, %v1586
  %1714 = vst.msk [vmem:[%s2 + $0x60] sm:$0xff] %vm774, %v1591
  %1715 = vst.msk [vmem:[%s2 + $0x68] sm:$0xff] %vm774, %v1594
  %1716 = vst.msk [vmem:[%s2 + $0x70] sm:$0xff] %vm774, %v1599
  %1717 = vst.msk [vmem:[%s2 + $0x78] sm:$0xff] %vm774, %v1602
  %1718 = vst.msk [vmem:[%s2 + $0x80] sm:$0xff] %vm774, %v1640
  %1719 = vst.msk [vmem:[%s2 + $0x88] sm:$0xff] %vm774, %v1643
  %1720 = vst.msk [vmem:[%s2 + $0x90] sm:$0xff] %vm774, %v1648
  %1721 = vst.msk [vmem:[%s2 + $0x98] sm:$0xff] %vm774, %v1651
  %1722 = vst.msk [vmem:[%s2 + $0xa0] sm:$0xff] %vm774, %v1656
  %1723 = vst.msk [vmem:[%s2 + $0xa8] sm:$0xff] %vm774, %v1659
  %1724 = vst.msk [vmem:[%s2 + $0xb0] sm:$0xff] %vm774, %v1664
  %1725 = vst.msk [vmem:[%s2 + $0xb8] sm:$0xff] %vm774, %v1667
  %1726 = vst.msk [vmem:[%s2 + $0xc0] sm:$0xff] %vm774, %v1672
  %1727 = vst.msk [vmem:[%s2 + $0xc8] sm:$0xff] %vm774, %v1675
  %1728 = vst.msk [vmem:[%s2 + $0xd0] sm:$0xff] %vm774, %v1680
  %1729 = vst.msk [vmem:[%s2 + $0xd8] sm:$0xff] %vm774, %v1683
  %1730 = vst.msk [vmem:[%s2 + $0xe0] sm:$0xff] %vm774, %v1688
  %1731 = vst.msk [vmem:[%s2 + $0xe8] sm:$0xff] %vm774, %v1691
  %1732 = vst.msk [vmem:[%s2 + $0xf0] sm:$0xff] %vm774, %v1696
  %1733 = vst.msk [vmem:[%s2 + $0xf8] sm:$0xff] %vm774, %v1699
  // Predicated region
  $region10: #{head_forward.1} parent=0 // pred_check
    _
  $region11: #{head_forward.1} parent=0 // pred_check_branch
    %1735 = sbr.rel (0) target = $region13
  $region12: #{head_forward.1} parent=0 // pred_region
    _
  $region13: #{head_forward.1} parent=0 // pred_fallthru
    _
  // Predicated region
  $region14: #{head_forward.1} parent=0 // pred_check
    _
  $region15: #{head_forward.1} parent=0 // pred_check_branch
    %1737 = sbr.rel (0) target = $region17
  $region16: #{head_forward.1} parent=0 // pred_region
    _
  $region17: #{head_forward.1} parent=0 // pred_fallthru
    _

</llo_original>
